<compile_context>
chip_gen: v7x
topology: tpu7x:2x2x1
jax: 0.10.0
libtpu: 0.0.40
codegen_flags: <defaults>
</compile_context>

<pallas_src>
import math
import functools

import numpy as np
import jax
import jax.numpy as jnp
from jax import lax
from jax.experimental import pallas as pl
from jax.experimental.pallas import tpu as pltpu


def _attention_kernel(xq_ref, xs_ref, mask_ref,
                      wq_ref, bq_ref, wk_ref, bk_ref, wv_ref, bv_ref,
                      wo_ref, bo_ref, gamma_ref, beta_ref,
                      out_ref,
                      k_scratch, v_scratch,
                      *, num_heads, head_dim, tq, eps, approx):
    qi = pl.program_id(1)
    S = xs_ref.shape[1]
    H = num_heads * head_dim
    cdt = k_scratch.dtype                      # MXU compute dtype (bf16 or f32)
    contract_last = (((1,), (1,)), ((), ()))   # contract last dims of both operands

    # ---- K/V projection, once per batch element, straight into transposed scratch ----
    # k_scratch[h, d, s] = sum_i Wk[h*dh+d, i] * x[s, i] + bk[h*dh+d]  (lane-dense in S)
    @pl.when(qi == 0)
    def _():
        xs = xs_ref[0]                                                     # (S, H) cdt
        kt = lax.dot_general(wk_ref[...], xs, contract_last,
                             preferred_element_type=jnp.float32)           # (H, S) f32
        k_scratch[...] = (kt.reshape(num_heads, head_dim, S)
                          + bk_ref[...]).astype(cdt)
        vt = lax.dot_general(wv_ref[...], xs, contract_last,
                             preferred_element_type=jnp.float32)           # (H, S) f32
        v_scratch[...] = (vt.reshape(num_heads, head_dim, S)
                          + bv_ref[...]).astype(cdt)

    xq = xq_ref[0]                             # (tq, H) f32: Q input / residual / LN
    xq_c = xq.astype(cdt)
    mask = mask_ref[0]                         # (1, S) f32, additive

    # ---- per-head attention + output projection (bounded (tq, S) live score tile) ----
    def head_body(h, proj_acc):
        # Q projection for head h; 1/sqrt(head_dim) already folded into wq/bq.
        q_h = (jnp.dot(xq_c, wq_ref[h], preferred_element_type=jnp.float32)
               + bq_ref[h])                                                # (tq, dh) f32
        s_h = jnp.dot(q_h.astype(cdt), k_scratch[h],
                      preferred_element_type=jnp.float32)                  # (tq, S) f32
        s_h = s_h + mask
        m = jnp.max(s_h, axis=-1, keepdims=True)
        p = jnp.exp(s_h - m)                                               # (tq, S) f32
        denom = jnp.sum(p, axis=-1, keepdims=True)                         # (tq, 1)
        ctx = lax.dot_general(p.astype(cdt), v_scratch[h], contract_last,
                              preferred_element_type=jnp.float32)          # (tq, dh) f32
        # Normalize after the PV matmul: head_dim-wide multiply instead of S-wide.
        ctx = ctx * pl.reciprocal(denom, approx=approx)                    # EUP
        # Per-head slice of the output dense; the head concat folds into the MXU sum.
        return proj_acc + jnp.dot(ctx.astype(cdt), wo_ref[h],
                                  preferred_element_type=jnp.float32)      # (tq, H)

    proj = lax.fori_loop(0, num_heads, head_body,
                         jnp.zeros((tq, H), jnp.float32))

    # ---- SelfOutput: bias + residual add + LayerNorm (all stats in f32) ----
    y = proj + bo_ref[...] + xq
    u = jnp.mean(y, axis=-1, keepdims=True)
    yc = y - u
    s = jnp.mean(yc * yc, axis=-1, keepdims=True)
    yn = yc * lax.rsqrt(s + eps)                                           # EUP rsqrt
    out_ref[0] = (gamma_ref[...] * yn + beta_ref[...]).astype(out_ref.dtype)


def attention_pallas(x, mask, params, *, num_heads, eps=1e-12, tq=None,
                     compute_dtype=jnp.bfloat16,
                     vmem_limit_bytes=64 * 1024 * 1024):
    B, S, H = x.shape
    head_dim = H // num_heads
    assert num_heads * head_dim == H

    # Query-block tile size (bounds the per-head score tile to (tq, S)).
    if tq is None:
        tq = S if S <= 256 else 256
    if S % tq != 0:
        tq = S  # TODO(synk): pad S instead for long, non-divisible sequence lengths.
    n_q = S // tq

    cdt = jnp.dtype(compute_dtype)
    approx = cdt != jnp.dtype(jnp.float32)
    scale = 1.0 / math.sqrt(head_dim)

    # nn.Linear stores (out, in). Pre-shape per-head so the kernel does ZERO transposes:
    #   wq: (nh, H, dh)   q_h   = xq @ wq[h]                 (attention scale folded in)
    #   wk/wv: (H, H)     K^T   = wk (.) x  (contract last)  -> (nh, dh, S) scratch
    #   wo: (nh, dh, H)   proj += ctx_h @ wo[h]
    wq_r = (params["wq"] * scale).reshape(num_heads, head_dim, H) \
        .transpose(0, 2, 1).astype(cdt)
    bq_r = (params["bq"] * scale).reshape(num_heads, 1, head_dim).astype(jnp.float32)
    wk_r = params["wk"].astype(cdt)
    bk_r = params["bk"].reshape(num_heads, head_dim, 1).astype(jnp.float32)
    wv_r = params["wv"].astype(cdt)
    bv_r = params["bv"].reshape(num_heads, head_dim, 1).astype(jnp.float32)
    wo_r = params["wo"].reshape(H, num_heads, head_dim) \
        .transpose(1, 2, 0).astype(cdt)
    bo_r = params["bo"].reshape(1, H).astype(jnp.float32)
    gamma = params["gamma"].reshape(1, H).astype(jnp.float32)
    beta = params["beta"].reshape(1, H).astype(jnp.float32)

    kernel = functools.partial(
        _attention_kernel,
        num_heads=num_heads, head_dim=head_dim, tq=tq, eps=eps, approx=approx)

    # Constant-index operands: single-buffered (no dead second buffer).
    const = pl.Buffered(1)

    grid_spec = pltpu.PrefetchScalarGridSpec(
        num_scalar_prefetch=0,
        grid=(B, n_q),
        in_specs=[
            # Per-query-block x slice (f32): Q projection, residual add, LayerNorm.
            pl.BlockSpec((1, tq, H), lambda b, q: (b, q, 0)),
            # Full-sequence x (compute dtype): only read at qi == 0 for the K/V
            # projection; block index depends only on b, so it is fetched once per batch.
            pl.BlockSpec((1, S, H), lambda b, q: (b, 0, 0)),
            # Additive attention mask (B, 1, S).
            pl.BlockSpec((1, 1, S), lambda b, q: (b, 0, 0)),
            pl.BlockSpec((num_heads, H, head_dim), lambda b, q: (0, 0, 0),
                         pipeline_mode=const),                              # Wq (scaled)
            pl.BlockSpec((num_heads, 1, head_dim), lambda b, q: (0, 0, 0),
                         pipeline_mode=const),                              # bq (scaled)
            pl.BlockSpec((H, H), lambda b, q: (0, 0), pipeline_mode=const),  # Wk
            pl.BlockSpec((num_heads, head_dim, 1), lambda b, q: (0, 0, 0),
                         pipeline_mode=const),                              # bk
            pl.BlockSpec((H, H), lambda b, q: (0, 0), pipeline_mode=const),  # Wv
            pl.BlockSpec((num_heads, head_dim, 1), lambda b, q: (0, 0, 0),
                         pipeline_mode=const),                              # bv
            pl.BlockSpec((num_heads, head_dim, H), lambda b, q: (0, 0, 0),
                         pipeline_mode=const),                              # Wo
            pl.BlockSpec((1, H), lambda b, q: (0, 0), pipeline_mode=const),  # bo
            pl.BlockSpec((1, H), lambda b, q: (0, 0), pipeline_mode=const),  # gamma
            pl.BlockSpec((1, H), lambda b, q: (0, 0), pipeline_mode=const),  # beta
        ],
        out_specs=pl.BlockSpec((1, tq, H), lambda b, q: (b, q, 0)),
        scratch_shapes=[
            pltpu.VMEM((num_heads, head_dim, S), cdt),   # K^T, persistent per batch elem
            pltpu.VMEM((num_heads, head_dim, S), cdt),   # V^T, persistent per batch elem
        ],
    )

    return pl.pallas_call(
        kernel,
        out_shape=jax.ShapeDtypeStruct((B, S, H), jnp.float32),
        grid_spec=grid_spec,
        compiler_params=pltpu.CompilerParams(
            dimension_semantics=("parallel", "arbitrary"),
            # v5e/v6e have 128 MiB physical VMEM; keep this <= ~48 MiB on v7x (64 MiB).
            vmem_limit_bytes=vmem_limit_bytes,
        ),
    )(x.astype(jnp.float32), x.astype(cdt), mask.astype(jnp.float32),
      wq_r, bq_r, wk_r, bk_r, wv_r, bv_r, wo_r, bo_r, gamma, beta)


def attention_reference(x, mask, params, *, num_heads, eps=1e-12):
    """Pure-JAX reference mirroring the PyTorch module (eval mode)."""
    B, S, H = x.shape
    dh = H // num_heads

    def linear(v, w, b):
        return jnp.einsum('bsh,oh->bso', v, w) + b

    q = linear(x, params["wq"], params["bq"])
    k = linear(x, params["wk"], params["bk"])
    v = linear(x, params["wv"], params["bv"])

    def split_heads(t):
        return t.reshape(B, S, num_heads, dh).transpose(0, 2, 1, 3)

    q, k, v = split_heads(q), split_heads(k), split_heads(v)
    scores = jnp.einsum('bhqd,bhkd->bhqk', q, k) / math.sqrt(dh)
    scores = scores + mask[:, None, :, :]
    probs = jax.nn.softmax(scores, axis=-1)
    ctx = jnp.einsum('bhqk,bhkd->bhqd', probs, v)
    ctx = ctx.transpose(0, 2, 1, 3).reshape(B, S, H)

    proj = linear(ctx, params["wo"], params["bo"])
    y = proj + x
    u = jnp.mean(y, axis=-1, keepdims=True)
    s = jnp.mean((y - u) ** 2, axis=-1, keepdims=True)
    yn = (y - u) / jnp.sqrt(s + eps)
    return params["gamma"] * yn + params["beta"]


if __name__ == "__main__":
    B, S, H, NH = 2, 8, 32, 4
    key = jax.random.PRNGKey(0)
    keys = jax.random.split(key, 10)

    scale = 0.05
    params = {
        "wq": scale * jax.random.normal(keys[0], (H, H), jnp.float32),
        "bq": scale * jax.random.normal(keys[1], (H,), jnp.float32),
        "wk": scale * jax.random.normal(keys[2], (H, H), jnp.float32),
        "bk": scale * jax.random.normal(keys[3], (H,), jnp.float32),
        "wv": scale * jax.random.normal(keys[4], (H, H), jnp.float32),
        "bv": scale * jax.random.normal(keys[5], (H,), jnp.float32),
        "wo": scale * jax.random.normal(keys[6], (H, H), jnp.float32),
        "bo": scale * jax.random.normal(keys[7], (H,), jnp.float32),
        "gamma": jnp.ones((H,), jnp.float32),
        "beta": jnp.zeros((H,), jnp.float32),
    }

    x = jax.random.normal(keys[8], (B, S, H), jnp.float32)
    # BERT-style additive mask: 0 for valid positions, -10000 for masked ones.
    valid = (jax.random.uniform(keys[9], (B, 1, S)) > 0.2).astype(jnp.float32)
    mask = (1.0 - valid) * -10000.0

    ref = attention_reference(x, mask, params, num_heads=NH)

    # f32 compute path (exact): tight tolerance.
    out_f32 = attention_pallas(x, mask, params, num_heads=NH,
                               compute_dtype=jnp.float32)
    out_f32 = jax.block_until_ready(out_f32)
    np.testing.assert_allclose(np.asarray(out_f32), np.asarray(ref),
                               rtol=1e-4, atol=1e-4)

    # bf16 MXU path (default, faster): bf16-level tolerance.
    out_bf16 = attention_pallas(x, mask, params, num_heads=NH,
                                compute_dtype=jnp.bfloat16)
    out_bf16 = jax.block_until_ready(out_bf16)
    np.testing.assert_allclose(np.asarray(out_bf16), np.asarray(ref),
                               rtol=3e-2, atol=3e-2)

    print("KERNEL_OK")
</pallas_src>

<mosaic_0001>
module attributes {stable_mosaic.version = 11 : i64} {
  func.func @_attention_kernel(%arg0: i32, %arg1: i32, %arg2: memref<1x8x32xf32, #tpu.memory_space<vmem>>, %arg3: memref<1x8x32xf32, #tpu.memory_space<vmem>>, %arg4: memref<1x1x8xf32, #tpu.memory_space<vmem>>, %arg5: memref<4x32x8xf32, #tpu.memory_space<vmem>>, %arg6: memref<4x1x8xf32, #tpu.memory_space<vmem>>, %arg7: memref<32x32xf32, #tpu.memory_space<vmem>>, %arg8: memref<4x8x1xf32, #tpu.memory_space<vmem>>, %arg9: memref<32x32xf32, #tpu.memory_space<vmem>>, %arg10: memref<4x8x1xf32, #tpu.memory_space<vmem>>, %arg11: memref<4x8x32xf32, #tpu.memory_space<vmem>>, %arg12: memref<1x32xf32, #tpu.memory_space<vmem>>, %arg13: memref<1x32xf32, #tpu.memory_space<vmem>>, %arg14: memref<1x32xf32, #tpu.memory_space<vmem>>, %arg15: memref<1x8x32xf32, #tpu.memory_space<vmem>>, %arg16: memref<4x8x8xf32, #tpu.memory_space<vmem>>, %arg17: memref<4x8x8xf32, #tpu.memory_space<vmem>>) attributes {dimension_semantics = [#tpu.dimension_semantics<parallel>, #tpu.dimension_semantics<arbitrary>], iteration_bounds = array<i64: 2, 1>, scalar_prefetch = 0 : i64, scratch_operands = 2 : i64, tpu.core_type = #tpu.core_type<tc>, window_params = [{transform_indices = @transform_0, window_bounds = array<i64: 1, 8, 32>}, {transform_indices = @transform_1, window_bounds = array<i64: 1, 8, 32>}, {transform_indices = @transform_2, window_bounds = array<i64: 1, 1, 8>}, {pipeline_mode = #tpu.pipeline_mode<synchronous>, transform_indices = @transform_3, window_bounds = array<i64: 4, 32, 8>}, {pipeline_mode = #tpu.pipeline_mode<synchronous>, transform_indices = @transform_4, window_bounds = array<i64: 4, 1, 8>}, {pipeline_mode = #tpu.pipeline_mode<synchronous>, transform_indices = @transform_5, window_bounds = array<i64: 32, 32>}, {pipeline_mode = #tpu.pipeline_mode<synchronous>, transform_indices = @transform_6, window_bounds = array<i64: 4, 8, 1>}, {pipeline_mode = #tpu.pipeline_mode<synchronous>, transform_indices = @transform_7, window_bounds = array<i64: 32, 32>}, {pipeline_mode = #tpu.pipeline_mode<synchronous>, transform_indices = @transform_8, window_bounds = array<i64: 4, 8, 1>}, {pipeline_mode = #tpu.pipeline_mode<synchronous>, transform_indices = @transform_9, window_bounds = array<i64: 4, 8, 32>}, {pipeline_mode = #tpu.pipeline_mode<synchronous>, transform_indices = @transform_10, window_bounds = array<i64: 1, 32>}, {pipeline_mode = #tpu.pipeline_mode<synchronous>, transform_indices = @transform_11, window_bounds = array<i64: 1, 32>}, {pipeline_mode = #tpu.pipeline_mode<synchronous>, transform_indices = @transform_12, window_bounds = array<i64: 1, 32>}, {transform_indices = @transform_13, window_bounds = array<i64: 1, 8, 32>}]} {
    %c0_i32 = arith.constant 0 : i32
    %0 = arith.cmpi eq, %arg1, %c0_i32 : i32
    %1 = arith.extui %0 : i1 to i32
    %c0_i32_0 = arith.constant 0 : i32
    %2 = arith.cmpi ne, %1, %c0_i32_0 : i32
    scf.if %2 {
      %c0_22 = arith.constant 0 : index
      %c0_23 = arith.constant 0 : index
      %c0_24 = arith.constant 0 : index
      %39 = vector.load %arg3[%c0_22, %c0_23, %c0_24] : memref<1x8x32xf32, #tpu.memory_space<vmem>>, vector<1x8x32xf32>
      %40 = vector.shape_cast %39 : vector<1x8x32xf32> to vector<8x32xf32>
      %c0_25 = arith.constant 0 : index
      %c0_26 = arith.constant 0 : index
      %41 = vector.load %arg7[%c0_25, %c0_26] : memref<32x32xf32, #tpu.memory_space<vmem>>, vector<32x32xf32>
      %cst_27 = arith.constant dense<0.000000e+00> : vector<32x8xf32>
      %42 = tpu.matmul %41, %40, %cst_27 {dimension_numbers = #tpu.dot_dimension_numbers<[1], [1], [0], [0], [0, 0, 1, 0], [], []>} : vector<32x32xf32>, vector<8x32xf32>, vector<32x8xf32> -> vector<32x8xf32>
      %43 = vector.shape_cast %42 : vector<32x8xf32> to vector<4x8x8xf32>
      %c0_28 = arith.constant 0 : index
      %c0_29 = arith.constant 0 : index
      %c0_30 = arith.constant 0 : index
      %44 = vector.load %arg8[%c0_28, %c0_29, %c0_30] : memref<4x8x1xf32, #tpu.memory_space<vmem>>, vector<4x8x1xf32>
      %45 = vector.broadcast %44 : vector<4x8x1xf32> to vector<4x8x8xf32>
      %46 = arith.addf %43, %45 : vector<4x8x8xf32>
      %c0_31 = arith.constant 0 : index
      %c0_32 = arith.constant 0 : index
      %c0_33 = arith.constant 0 : index
      %47 = vector.load %arg16[%c0_31, %c0_32, %c0_33] : memref<4x8x8xf32, #tpu.memory_space<vmem>>, vector<4x8x8xf32>
      tpu.vector_store %arg16[%c0_31, %c0_32, %c0_33], %46 {strides = array<i32>} : memref<4x8x8xf32, #tpu.memory_space<vmem>>, vector<4x8x8xf32>,
      %c0_34 = arith.constant 0 : index
      %c0_35 = arith.constant 0 : index
      %48 = vector.load %arg9[%c0_34, %c0_35] : memref<32x32xf32, #tpu.memory_space<vmem>>, vector<32x32xf32>
      %cst_36 = arith.constant dense<0.000000e+00> : vector<32x8xf32>
      %49 = tpu.matmul %48, %40, %cst_36 {dimension_numbers = #tpu.dot_dimension_numbers<[1], [1], [0], [0], [0, 0, 1, 0], [], []>} : vector<32x32xf32>, vector<8x32xf32>, vector<32x8xf32> -> vector<32x8xf32>
      %50 = vector.shape_cast %49 : vector<32x8xf32> to vector<4x8x8xf32>
      %c0_37 = arith.constant 0 : index
      %c0_38 = arith.constant 0 : index
      %c0_39 = arith.constant 0 : index
      %51 = vector.load %arg10[%c0_37, %c0_38, %c0_39] : memref<4x8x1xf32, #tpu.memory_space<vmem>>, vector<4x8x1xf32>
      %52 = vector.broadcast %51 : vector<4x8x1xf32> to vector<4x8x8xf32>
      %53 = arith.addf %50, %52 : vector<4x8x8xf32>
      %c0_40 = arith.constant 0 : index
      %c0_41 = arith.constant 0 : index
      %c0_42 = arith.constant 0 : index
      %54 = vector.load %arg17[%c0_40, %c0_41, %c0_42] : memref<4x8x8xf32, #tpu.memory_space<vmem>>, vector<4x8x8xf32>
      tpu.vector_store %arg17[%c0_40, %c0_41, %c0_42], %53 {strides = array<i32>} : memref<4x8x8xf32, #tpu.memory_space<vmem>>, vector<4x8x8xf32>,
    } else {
    }
    %c0 = arith.constant 0 : index
    %c0_1 = arith.constant 0 : index
    %c0_2 = arith.constant 0 : index
    %3 = vector.load %arg2[%c0, %c0_1, %c0_2] : memref<1x8x32xf32, #tpu.memory_space<vmem>>, vector<1x8x32xf32>
    %4 = vector.shape_cast %3 : vector<1x8x32xf32> to vector<8x32xf32>
    %c0_3 = arith.constant 0 : index
    %c0_4 = arith.constant 0 : index
    %c0_5 = arith.constant 0 : index
    %5 = vector.load %arg4[%c0_3, %c0_4, %c0_5] : memref<1x1x8xf32, #tpu.memory_space<vmem>>, vector<1x1x8xf32>
    %6 = vector.shape_cast %5 : vector<1x1x8xf32> to vector<1x8xf32>
    %cst = arith.constant 0.000000e+00 : f32
    %7 = vector.broadcast %cst : f32 to vector<8x32xf32>
    %c0_i32_6 = arith.constant 0 : i32
    %c4_i32 = arith.constant 4 : i32
    %8 = arith.addi %c0_i32_6, %c4_i32 : i32
    %c1_i32 = arith.constant 1 : i32
    %9 = scf.for %arg18 = %c0_i32_6 to %8 step %c1_i32 iter_args(%arg19 = %7) -> (vector<8x32xf32>)  : i32 {
      %39 = arith.index_cast %arg18 : i32 to index
      %c0_22 = arith.constant 0 : index
      %c0_23 = arith.constant 0 : index
      %40 = vector.load %arg5[%39, %c0_22, %c0_23] : memref<4x32x8xf32, #tpu.memory_space<vmem>>, vector<1x32x8xf32>
      %41 = vector.shape_cast %40 : vector<1x32x8xf32> to vector<32x8xf32>
      %cst_24 = arith.constant dense<0.000000e+00> : vector<8x8xf32>
      %42 = tpu.matmul %4, %41, %cst_24 {dimension_numbers = #tpu.dot_dimension_numbers<[1], [0], [0], [1], [0, 0, 1, 1], [], []>} : vector<8x32xf32>, vector<32x8xf32>, vector<8x8xf32> -> vector<8x8xf32>
      %43 = arith.index_cast %arg18 : i32 to index
      %c0_25 = arith.constant 0 : index
      %c0_26 = arith.constant 0 : index
      %44 = vector.load %arg6[%43, %c0_25, %c0_26] : memref<4x1x8xf32, #tpu.memory_space<vmem>>, vector<1x1x8xf32>
      %45 = vector.shape_cast %44 : vector<1x1x8xf32> to vector<1x8xf32>
      %46 = vector.broadcast %45 : vector<1x8xf32> to vector<8x8xf32>
      %47 = arith.addf %42, %46 : vector<8x8xf32>
      %48 = arith.index_cast %arg18 : i32 to index
      %c0_27 = arith.constant 0 : index
      %c0_28 = arith.constant 0 : index
      %49 = vector.load %arg16[%48, %c0_27, %c0_28] : memref<4x8x8xf32, #tpu.memory_space<vmem>>, vector<1x8x8xf32>
      %50 = vector.shape_cast %49 : vector<1x8x8xf32> to vector<8x8xf32>
      %cst_29 = arith.constant dense<0.000000e+00> : vector<8x8xf32>
      %51 = tpu.matmul %47, %50, %cst_29 {dimension_numbers = #tpu.dot_dimension_numbers<[1], [0], [0], [1], [0, 0, 1, 1], [], []>} : vector<8x8xf32>, vector<8x8xf32>, vector<8x8xf32> -> vector<8x8xf32>
      %52 = vector.broadcast %6 : vector<1x8xf32> to vector<8x8xf32>
      %53 = arith.addf %51, %52 : vector<8x8xf32>
      %cst_30 = arith.constant dense<0xFF800000> : vector<8xf32>
      %54 = vector.multi_reduction <maximumf>, %53, %cst_30 [1] : vector<8x8xf32> to vector<8xf32>
      %55 = vector.shape_cast %54 : vector<8xf32> to vector<8x1xf32>
      %56 = vector.broadcast %55 : vector<8x1xf32> to vector<8x8xf32>
      %57 = arith.subf %53, %56 : vector<8x8xf32>
      %58 = math.exp %57 : vector<8x8xf32>
      %cst_31 = arith.constant dense<0.000000e+00> : vector<8xf32>
      %59 = vector.multi_reduction <add>, %58, %cst_31 [1] : vector<8x8xf32> to vector<8xf32>
      %60 = vector.shape_cast %59 : vector<8xf32> to vector<8x1xf32>
      %61 = arith.index_cast %arg18 : i32 to index
      %c0_32 = arith.constant 0 : index
      %c0_33 = arith.constant 0 : index
      %62 = vector.load %arg17[%61, %c0_32, %c0_33] : memref<4x8x8xf32, #tpu.memory_space<vmem>>, vector<1x8x8xf32>
      %63 = vector.shape_cast %62 : vector<1x8x8xf32> to vector<8x8xf32>
      %cst_34 = arith.constant dense<0.000000e+00> : vector<8x8xf32>
      %64 = tpu.matmul %58, %63, %cst_34 {dimension_numbers = #tpu.dot_dimension_numbers<[1], [1], [0], [0], [0, 0, 1, 0], [], []>} : vector<8x8xf32>, vector<8x8xf32>, vector<8x8xf32> -> vector<8x8xf32>
      %65 = tpu.reciprocal %60 : vector<8x1xf32> -> vector<8x1xf32>
      %66 = vector.broadcast %65 : vector<8x1xf32> to vector<8x8xf32>
      %67 = arith.mulf %64, %66 : vector<8x8xf32>
      %68 = arith.index_cast %arg18 : i32 to index
      %c0_35 = arith.constant 0 : index
      %c0_36 = arith.constant 0 : index
      %69 = vector.load %arg11[%68, %c0_35, %c0_36] : memref<4x8x32xf32, #tpu.memory_space<vmem>>, vector<1x8x32xf32>
      %70 = vector.shape_cast %69 : vector<1x8x32xf32> to vector<8x32xf32>
      %cst_37 = arith.constant dense<0.000000e+00> : vector<8x32xf32>
      %71 = tpu.matmul %67, %70, %cst_37 {dimension_numbers = #tpu.dot_dimension_numbers<[1], [0], [0], [1], [0, 0, 1, 1], [], []>} : vector<8x8xf32>, vector<8x32xf32>, vector<8x32xf32> -> vector<8x32xf32>
      %72 = arith.addf %arg19, %71 : vector<8x32xf32>
      scf.yield %72 : vector<8x32xf32>
    }
    %c4_i32_7 = arith.constant 4 : i32
    %c0_8 = arith.constant 0 : index
    %c0_9 = arith.constant 0 : index
    %10 = vector.load %arg12[%c0_8, %c0_9] : memref<1x32xf32, #tpu.memory_space<vmem>>, vector<1x32xf32>
    %11 = vector.broadcast %10 : vector<1x32xf32> to vector<8x32xf32>
    %12 = arith.addf %9, %11 : vector<8x32xf32>
    %13 = arith.addf %12, %4 : vector<8x32xf32>
    %cst_10 = arith.constant dense<0.000000e+00> : vector<8xf32>
    %14 = vector.multi_reduction <add>, %13, %cst_10 [1] : vector<8x32xf32> to vector<8xf32>
    %15 = vector.shape_cast %14 : vector<8xf32> to vector<8x1xf32>
    %cst_11 = arith.constant 3.200000e+01 : f32
    %16 = vector.broadcast %cst_11 : f32 to vector<8x1xf32>
    %17 = arith.divf %15, %16 : vector<8x1xf32>
    %18 = vector.broadcast %17 : vector<8x1xf32> to vector<8x32xf32>
    %19 = arith.subf %13, %18 : vector<8x32xf32>
    %20 = arith.mulf %19, %19 : vector<8x32xf32>
    %cst_12 = arith.constant dense<0.000000e+00> : vector<8xf32>
    %21 = vector.multi_reduction <add>, %20, %cst_12 [1] : vector<8x32xf32> to vector<8xf32>
    %22 = vector.shape_cast %21 : vector<8xf32> to vector<8x1xf32>
    %cst_13 = arith.constant 3.200000e+01 : f32
    %23 = vector.broadcast %cst_13 : f32 to vector<8x1xf32>
    %24 = arith.divf %22, %23 : vector<8x1xf32>
    %cst_14 = arith.constant 9.99999996E-13 : f32
    %25 = vector.broadcast %cst_14 : f32 to vector<8x1xf32>
    %26 = arith.addf %24, %25 : vector<8x1xf32>
    %27 = math.rsqrt %26 : vector<8x1xf32>
    %28 = vector.broadcast %27 : vector<8x1xf32> to vector<8x32xf32>
    %29 = arith.mulf %19, %28 : vector<8x32xf32>
    %c0_15 = arith.constant 0 : index
    %c0_16 = arith.constant 0 : index
    %30 = vector.load %arg13[%c0_15, %c0_16] : memref<1x32xf32, #tpu.memory_space<vmem>>, vector<1x32xf32>
    %31 = vector.broadcast %30 : vector<1x32xf32> to vector<8x32xf32>
    %32 = arith.mulf %31, %29 : vector<8x32xf32>
    %c0_17 = arith.constant 0 : index
    %c0_18 = arith.constant 0 : index
    %33 = vector.load %arg14[%c0_17, %c0_18] : memref<1x32xf32, #tpu.memory_space<vmem>>, vector<1x32xf32>
    %34 = vector.broadcast %33 : vector<1x32xf32> to vector<8x32xf32>
    %35 = arith.addf %32, %34 : vector<8x32xf32>
    %c0_19 = arith.constant 0 : index
    %c0_20 = arith.constant 0 : index
    %c0_21 = arith.constant 0 : index
    %36 = vector.load %arg15[%c0_19, %c0_20, %c0_21] : memref<1x8x32xf32, #tpu.memory_space<vmem>>, vector<1x8x32xf32>
    %37 = vector.shape_cast %36 : vector<1x8x32xf32> to vector<8x32xf32>
    %38 = vector.shape_cast %35 : vector<8x32xf32> to vector<1x8x32xf32>
    tpu.vector_store %arg15[%c0_19, %c0_20, %c0_21], %38 {strides = array<i32>} : memref<1x8x32xf32, #tpu.memory_space<vmem>>, vector<1x8x32xf32>,
    return
  }
  func.func @transform_0(%arg0: i32, %arg1: i32) -> (i32, i32, i32) {
    %c0_i32 = arith.constant 0 : i32
    %c0_i32_0 = arith.constant 0 : i32
    return %arg0, %arg1, %c0_i32 : i32, i32, i32
  }
  func.func @transform_1(%arg0: i32, %arg1: i32) -> (i32, i32, i32) {
    %c0_i32 = arith.constant 0 : i32
    %c0_i32_0 = arith.constant 0 : i32
    %c0_i32_1 = arith.constant 0 : i32
    return %arg0, %c0_i32, %c0_i32_0 : i32, i32, i32
  }
  func.func @transform_2(%arg0: i32, %arg1: i32) -> (i32, i32, i32) {
    %c0_i32 = arith.constant 0 : i32
    %c0_i32_0 = arith.constant 0 : i32
    %c0_i32_1 = arith.constant 0 : i32
    return %arg0, %c0_i32, %c0_i32_0 : i32, i32, i32
  }
  func.func @transform_3(%arg0: i32, %arg1: i32) -> (i32, i32, i32) {
    %c0_i32 = arith.constant 0 : i32
    %c0_i32_0 = arith.constant 0 : i32
    %c0_i32_1 = arith.constant 0 : i32
    %c0_i32_2 = arith.constant 0 : i32
    return %c0_i32, %c0_i32_0, %c0_i32_1 : i32, i32, i32
  }
  func.func @transform_4(%arg0: i32, %arg1: i32) -> (i32, i32, i32) {
    %c0_i32 = arith.constant 0 : i32
    %c0_i32_0 = arith.constant 0 : i32
    %c0_i32_1 = arith.constant 0 : i32
    %c0_i32_2 = arith.constant 0 : i32
    return %c0_i32, %c0_i32_0, %c0_i32_1 : i32, i32, i32
  }
  func.func @transform_5(%arg0: i32, %arg1: i32) -> (i32, i32) {
    %c0_i32 = arith.constant 0 : i32
    %c0_i32_0 = arith.constant 0 : i32
    %c0_i32_1 = arith.constant 0 : i32
    return %c0_i32, %c0_i32_0 : i32, i32
  }
  func.func @transform_6(%arg0: i32, %arg1: i32) -> (i32, i32, i32) {
    %c0_i32 = arith.constant 0 : i32
    %c0_i32_0 = arith.constant 0 : i32
    %c0_i32_1 = arith.constant 0 : i32
    %c0_i32_2 = arith.constant 0 : i32
    return %c0_i32, %c0_i32_0, %c0_i32_1 : i32, i32, i32
  }
  func.func @transform_7(%arg0: i32, %arg1: i32) -> (i32, i32) {
    %c0_i32 = arith.constant 0 : i32
    %c0_i32_0 = arith.constant 0 : i32
    %c0_i32_1 = arith.constant 0 : i32
    return %c0_i32, %c0_i32_0 : i32, i32
  }
  func.func @transform_8(%arg0: i32, %arg1: i32) -> (i32, i32, i32) {
    %c0_i32 = arith.constant 0 : i32
    %c0_i32_0 = arith.constant 0 : i32
    %c0_i32_1 = arith.constant 0 : i32
    %c0_i32_2 = arith.constant 0 : i32
    return %c0_i32, %c0_i32_0, %c0_i32_1 : i32, i32, i32
  }
  func.func @transform_9(%arg0: i32, %arg1: i32) -> (i32, i32, i32) {
    %c0_i32 = arith.constant 0 : i32
    %c0_i32_0 = arith.constant 0 : i32
    %c0_i32_1 = arith.constant 0 : i32
    %c0_i32_2 = arith.constant 0 : i32
    return %c0_i32, %c0_i32_0, %c0_i32_1 : i32, i32, i32
  }
  func.func @transform_10(%arg0: i32, %arg1: i32) -> (i32, i32) {
    %c0_i32 = arith.constant 0 : i32
    %c0_i32_0 = arith.constant 0 : i32
    %c0_i32_1 = arith.constant 0 : i32
    return %c0_i32, %c0_i32_0 : i32, i32
  }
  func.func @transform_11(%arg0: i32, %arg1: i32) -> (i32, i32) {
    %c0_i32 = arith.constant 0 : i32
    %c0_i32_0 = arith.constant 0 : i32
    %c0_i32_1 = arith.constant 0 : i32
    return %c0_i32, %c0_i32_0 : i32, i32
  }
  func.func @transform_12(%arg0: i32, %arg1: i32) -> (i32, i32) {
    %c0_i32 = arith.constant 0 : i32
    %c0_i32_0 = arith.constant 0 : i32
    %c0_i32_1 = arith.constant 0 : i32
    return %c0_i32, %c0_i32_0 : i32, i32
  }
  func.func @transform_13(%arg0: i32, %arg1: i32) -> (i32, i32, i32) {
    %c0_i32 = arith.constant 0 : i32
    %c0_i32_0 = arith.constant 0 : i32
    return %arg0, %arg1, %c0_i32 : i32, i32, i32
  }
}

</mosaic_0001>

<llo_original>
// kernel: tpu_custom_call.1
$region0: #{tpu_custom_call.1}
  #allocation0 [shape = 'u32[]', space=smem, size = 0x4, offset = 0x4, fixed_abs, tag = 'smem constant byte address 0x4 - core index']
  #allocation1 [shape = 'u32[144,128]{1,0:T(1,128)}', space=vmem, size = 0x12000, scoped, tag = 'internal scratch']
  #allocation2 [shape = 'f32[4,8,8]{2,1,0:T(8,128)}', space=vmem, size = 0x4000, scoped, tag = 'scratch operand']
  #allocation3 [shape = 'f32[4,8,8]{2,1,0:T(8,128)}', space=vmem, size = 0x4000, scoped, tag = 'scratch operand']
  %s0 = inlined_call_operand.hbm [shape: f32[2,8,32], index: 0, kind: input, shape index: {}]
  %s1 = inlined_call_operand.hbm [shape: f32[2,8,32], index: 1, kind: input, shape index: {}]
  %s2 = inlined_call_operand.hbm [shape: f32[2,1,8], index: 2, kind: input, shape index: {}]
  %s3 = inlined_call_operand.hbm [shape: f32[4,32,8], index: 3, kind: input, shape index: {}]
  %s4 = inlined_call_operand.hbm [shape: f32[4,1,8], index: 4, kind: input, shape index: {}]
  %s5 = inlined_call_operand.hbm [shape: f32[32,32], index: 5, kind: input, shape index: {}]
  %s6 = inlined_call_operand.hbm [shape: f32[4,8,1], index: 6, kind: input, shape index: {}]
  %s7 = inlined_call_operand.hbm [shape: f32[32,32], index: 7, kind: input, shape index: {}]
  %s8 = inlined_call_operand.hbm [shape: f32[4,8,1], index: 8, kind: input, shape index: {}]
  %s9 = inlined_call_operand.hbm [shape: f32[4,8,32], index: 9, kind: input, shape index: {}]
  %s10 = inlined_call_operand.hbm [shape: f32[1,32], index: 10, kind: input, shape index: {}]
  %s11 = inlined_call_operand.hbm [shape: f32[1,32], index: 11, kind: input, shape index: {}]
  %s12 = inlined_call_operand.hbm [shape: f32[1,32], index: 12, kind: input, shape index: {}]
  %s13 = inlined_call_operand.hbm [shape: f32[2,8,32], index: 13, kind: output, shape index: {}]
  %s14 = sld [smem:[#allocation0]]
  $region148: #{tpu_custom_call.1} parent=0
    _
  %s16 = ssub.s32 1, %s14
  %s17 = scalar_select 0, %s16, %s14
  $region1: #{tpu_custom_call.1} parent=0
    #allocation4 [shape = 'u8[8192]{0}', space=vmem, size = 0x2000, scoped, tag = 'input window, operand 0']
    #allocation5 [shape = 's32[2]{0}', space=sflag, size = 0x8, scoped, tag = 'scoped memory for tpu_custom_call.1']
    #allocation6 [shape = 's32[2]{0}', space=sflag, size = 0x8, scoped, tag = 'scoped memory for tpu_custom_call.1']
    #allocation7 [shape = 'u8[8192]{0}', space=vmem, size = 0x2000, scoped, tag = 'input window, operand 1']
    #allocation8 [shape = 's32[2]{0}', space=sflag, size = 0x8, scoped, tag = 'scoped memory for tpu_custom_call.1']
    #allocation9 [shape = 'u8[1024]{0}', space=vmem, size = 0x400, scoped, tag = 'input window, operand 2']
    #allocation10 [shape = 'u8[65536]{0}', space=vmem, size = 0x10000, scoped, tag = 'input window, operand 3, single buffered']
    #allocation11 [shape = 's32[1]{0}', space=sflag, size = 0x4, scoped, tag = 'scoped memory for tpu_custom_call.1']
    #allocation12 [shape = 'u8[2048]{0}', space=vmem, size = 0x800, scoped, tag = 'input window, operand 4, single buffered']
    #allocation13 [shape = 'u8[16384]{0}', space=vmem, size = 0x4000, scoped, tag = 'input window, operand 5, single buffered']
    #allocation14 [shape = 's32[1]{0}', space=sflag, size = 0x4, scoped, tag = 'scoped memory for tpu_custom_call.1']
    #allocation15 [shape = 'u8[16384]{0}', space=vmem, size = 0x4000, scoped, tag = 'input window, operand 6, single buffered']
    #allocation16 [shape = 'u8[16384]{0}', space=vmem, size = 0x4000, scoped, tag = 'input window, operand 7, single buffered']
    #allocation17 [shape = 's32[1]{0}', space=sflag, size = 0x4, scoped, tag = 'scoped memory for tpu_custom_call.1']
    #allocation18 [shape = 'u8[16384]{0}', space=vmem, size = 0x4000, scoped, tag = 'input window, operand 8, single buffered']
    #allocation19 [shape = 'u8[16384]{0}', space=vmem, size = 0x4000, scoped, tag = 'input window, operand 9, single buffered']
    #allocation20 [shape = 's32[1]{0}', space=sflag, size = 0x4, scoped, tag = 'scoped memory for tpu_custom_call.1']
    #allocation21 [shape = 'u8[512]{0}', space=vmem, size = 0x400, scoped, tag = 'input window, operand 10, single buffered']
    #allocation22 [shape = 'u8[512]{0}', space=vmem, size = 0x400, scoped, tag = 'input window, operand 11, single buffered']
    #allocation23 [shape = 's32[1]{0}', space=sflag, size = 0x4, scoped, tag = 'scoped memory for tpu_custom_call.1']
    #allocation24 [shape = 'u8[512]{0}', space=vmem, size = 0x400, scoped, tag = 'input window, operand 12, single buffered']
    #allocation25 [shape = 'u8[8192]{0}', space=vmem, size = 0x2000, scoped, tag = 'output window, operand 0']
    %18 = vsyncpa [#allocation5], 0
    %s19 = scalar_lea.sflag [#allocation5], 1
    %20 = vsyncpa %s19, 0
    %21 = vsyncpa [#allocation8], 0
    %s22 = scalar_lea.sflag [#allocation8], 1
    %23 = vsyncpa %s22, 0
    %24 = vsyncpa [#allocation11], 0
    %25 = vsyncpa [#allocation14], 0
    %26 = vsyncpa [#allocation17], 0
    %27 = vsyncpa [#allocation20], 0
    %28 = vsyncpa [#allocation23], 0
    %29 = vsyncpa [#allocation6], 0
    %s30 = scalar_lea.sflag [#allocation6], 1
    %31 = vsyncpa %s30, 0
    loop: start=0, step=1, limit=4
    $region2: #{tpu_custom_call.1} parent=1 // loop_pre_header
      _
    $region3: #{tpu_custom_call.1} parent=1 // loop_header
      %s33 = sphi 0, %s37
      %p34 = scmp.ge.s32.totalorder %s33, 4
      %s40 = sphi 0, %s52
      %s41 = sphi 0, %s48
      %s42 = sphi 0, %s40
      %s43 = sphi 0, %s41
      %s44 = sphi 0, %s42
      %s45 = sphi 0, %s43
      %s57 = sphi 0, %s59
      %s60 = sphi 0, %s57
      %s61 = sphi 0, %s60
      %s77 = sphi 0, %s61
      %s83 = sphi 0, %s85
      %s86 = sphi 0, %s83
      %s87 = sphi 0, %s86
      %s103 = sphi 0, %s87
      %s109 = sphi 0, %s111
      %s112 = sphi 0, %s109
      %s113 = sphi 0, %s112
      %s129 = sphi 0, %s113
      %s133 = sphi 0, %s133
      %s135 = sphi 0, %s133
      %s136 = sphi 0, %s135
      %s150 = sphi 0, %s136
      %s154 = sphi 0, %s154
      %s156 = sphi 0, %s154
      %s157 = sphi 0, %s156
      %s171 = sphi 0, %s157
      %s175 = sphi 0, %s175
      %s177 = sphi 0, %s175
      %s178 = sphi 0, %s177
      %s192 = sphi 0, %s178
      %s196 = sphi 0, %s196
      %s198 = sphi 0, %s196
      %s199 = sphi 0, %s198
      %s213 = sphi 0, %s199
      %s217 = sphi 0, %s217
      %s219 = sphi 0, %s217
      %s220 = sphi 0, %s219
      %s234 = sphi 0, %s220
      %s238 = sphi 0, %s238
      %s240 = sphi 0, %s238
      %s241 = sphi 0, %s240
      %s255 = sphi 0, %s241
      %s259 = sphi 0, %s259
      %s261 = sphi 0, %s259
      %s262 = sphi 0, %s261
      %s276 = sphi 0, %s262
      %s280 = sphi 0, %s280
      %s282 = sphi 0, %s280
      %s283 = sphi 0, %s282
      %s297 = sphi 0, %s283
      %s301 = sphi 0, %s301
      %s303 = sphi 0, %s301
      %s304 = sphi 0, %s303
      %s318 = sphi 0, %s304
      %s322 = sphi 0, %s322
      %s324 = sphi 0, %s322
      %s325 = sphi 0, %s324
      %s339 = sphi 0, %s325
      %s347 = sphi 0, %s349
      %s350 = sphi 0, %s347
      %s351 = sphi 0, %s350
      %s367 = sphi 0, %s351
    $region4: #{tpu_custom_call.1} parent=1 // loop_header_branch
      %36 = sbr.rel (%p34) target = $region8
    $region5: #{tpu_custom_call.1} parent=1 // loop_body
      %s38 = ssub.s32 %s33, 1
      %s39 = ssub.s32 %s33, 2
      %s46 = sadd.s32 1, %s41
      %p47 = scmp.ge.s32.totalorder %s46, 1
      %s48 = scalar_select %p47, 0, %s46
      %s49 = sadd.s32 1, %s40
      %s50 = scalar_select %p47, %s49, %s40
      %p51 = scmp.ge.s32.totalorder %s50, 2
      %s52 = scalar_select %p51, 0, %s50
      %s53 = ssub.s32 %s40, %s52
      %s54 = ssub.s32 %s41, %s48
      %s55 = sor.u32 %s53, %s54
      %p56 = scmp.eq.s32.totalorder %s55, 0
      %s58 = sadd.s32 %s57, 1
      %s59 = scalar_select %p56, %s57, %s58
      %p62 = pneg %p56
      %p63 = scmp.eq.s32.totalorder %s33, 1
      %p64 = por %p62, %p63
      %p65 = scmp.ne.s32.totalorder %s57, %s60
      %p66 = scmp.eq.s32.totalorder %s33, 0
      %p67 = por %p65, %p66
      %p68 = scmp.ne.s32.totalorder %s57, %s60
      %p69 = scmp.eq.s32.totalorder %s38, 1
      %p70 = por %p68, %p69
      %p71 = scmp.ne.s32.totalorder %s60, %s61
      %p72 = scmp.eq.s32.totalorder %s38, 0
      %p73 = por %p71, %p72
      %p74 = scmp.ne.s32.totalorder %s60, %s61
      %p75 = scmp.eq.s32.totalorder %s39, 1
      %p76 = por %p74, %p75
      %p78 = scmp.ne.s32.totalorder %s61, %s77
      %p79 = scmp.eq.s32.totalorder %s39, 0
      %p80 = por %p78, %p79
      %s81 = ssub.s32 %s40, %s52
      %p82 = scmp.eq.s32.totalorder %s81, 0
      %s84 = sadd.s32 %s83, 1
      %s85 = scalar_select %p82, %s83, %s84
      %p88 = pneg %p82
      %p89 = scmp.eq.s32.totalorder %s33, 1
      %p90 = por %p88, %p89
      %p91 = scmp.ne.s32.totalorder %s83, %s86
      %p92 = scmp.eq.s32.totalorder %s33, 0
      %p93 = por %p91, %p92
      %p94 = scmp.ne.s32.totalorder %s83, %s86
      %p95 = scmp.eq.s32.totalorder %s38, 1
      %p96 = por %p94, %p95
      %p97 = scmp.ne.s32.totalorder %s86, %s87
      %p98 = scmp.eq.s32.totalorder %s38, 0
      %p99 = por %p97, %p98
      %p100 = scmp.ne.s32.totalorder %s86, %s87
      %p101 = scmp.eq.s32.totalorder %s39, 1
      %p102 = por %p100, %p101
      %p104 = scmp.ne.s32.totalorder %s87, %s103
      %p105 = scmp.eq.s32.totalorder %s39, 0
      %p106 = por %p104, %p105
      %s107 = ssub.s32 %s40, %s52
      %p108 = scmp.eq.s32.totalorder %s107, 0
      %s110 = sadd.s32 %s109, 1
      %s111 = scalar_select %p108, %s109, %s110
      %p114 = pneg %p108
      %p115 = scmp.eq.s32.totalorder %s33, 1
      %p116 = por %p114, %p115
      %p117 = scmp.ne.s32.totalorder %s109, %s112
      %p118 = scmp.eq.s32.totalorder %s33, 0
      %p119 = por %p117, %p118
      %p120 = scmp.ne.s32.totalorder %s109, %s112
      %p121 = scmp.eq.s32.totalorder %s38, 1
      %p122 = por %p120, %p121
      %p123 = scmp.ne.s32.totalorder %s112, %s113
      %p124 = scmp.eq.s32.totalorder %s38, 0
      %p125 = por %p123, %p124
      %p126 = scmp.ne.s32.totalorder %s112, %s113
      %p127 = scmp.eq.s32.totalorder %s39, 1
      %p128 = por %p126, %p127
      %p130 = scmp.ne.s32.totalorder %s113, %s129
      %p131 = scmp.eq.s32.totalorder %s39, 0
      %p132 = por %p130, %p131
      %s134 = sadd.s32 %s133, 1
      %p137 = scmp.eq.s32.totalorder %s33, 1
      %p138 = scmp.ne.s32.totalorder %s133, %s135
      %p139 = scmp.eq.s32.totalorder %s33, 0
      %p140 = por %p138, %p139
      %p141 = scmp.ne.s32.totalorder %s133, %s135
      %p142 = scmp.eq.s32.totalorder %s38, 1
      %p143 = por %p141, %p142
      %p144 = scmp.ne.s32.totalorder %s135, %s136
      %p145 = scmp.eq.s32.totalorder %s38, 0
      %p146 = por %p144, %p145
      %p147 = scmp.ne.s32.totalorder %s135, %s136
      %p148 = scmp.eq.s32.totalorder %s39, 1
      %p149 = por %p147, %p148
      %p151 = scmp.ne.s32.totalorder %s136, %s150
      %p152 = scmp.eq.s32.totalorder %s39, 0
      %p153 = por %p151, %p152
      %s155 = sadd.s32 %s154, 1
      %p158 = scmp.eq.s32.totalorder %s33, 1
      %p159 = scmp.ne.s32.totalorder %s154, %s156
      %p160 = scmp.eq.s32.totalorder %s33, 0
      %p161 = por %p159, %p160
      %p162 = scmp.ne.s32.totalorder %s154, %s156
      %p163 = scmp.eq.s32.totalorder %s38, 1
      %p164 = por %p162, %p163
      %p165 = scmp.ne.s32.totalorder %s156, %s157
      %p166 = scmp.eq.s32.totalorder %s38, 0
      %p167 = por %p165, %p166
      %p168 = scmp.ne.s32.totalorder %s156, %s157
      %p169 = scmp.eq.s32.totalorder %s39, 1
      %p170 = por %p168, %p169
      %p172 = scmp.ne.s32.totalorder %s157, %s171
      %p173 = scmp.eq.s32.totalorder %s39, 0
      %p174 = por %p172, %p173
      %s176 = sadd.s32 %s175, 1
      %p179 = scmp.eq.s32.totalorder %s33, 1
      %p180 = scmp.ne.s32.totalorder %s175, %s177
      %p181 = scmp.eq.s32.totalorder %s33, 0
      %p182 = por %p180, %p181
      %p183 = scmp.ne.s32.totalorder %s175, %s177
      %p184 = scmp.eq.s32.totalorder %s38, 1
      %p185 = por %p183, %p184
      %p186 = scmp.ne.s32.totalorder %s177, %s178
      %p187 = scmp.eq.s32.totalorder %s38, 0
      %p188 = por %p186, %p187
      %p189 = scmp.ne.s32.totalorder %s177, %s178
      %p190 = scmp.eq.s32.totalorder %s39, 1
      %p191 = por %p189, %p190
      %p193 = scmp.ne.s32.totalorder %s178, %s192
      %p194 = scmp.eq.s32.totalorder %s39, 0
      %p195 = por %p193, %p194
      %s197 = sadd.s32 %s196, 1
      %p200 = scmp.eq.s32.totalorder %s33, 1
      %p201 = scmp.ne.s32.totalorder %s196, %s198
      %p202 = scmp.eq.s32.totalorder %s33, 0
      %p203 = por %p201, %p202
      %p204 = scmp.ne.s32.totalorder %s196, %s198
      %p205 = scmp.eq.s32.totalorder %s38, 1
      %p206 = por %p204, %p205
      %p207 = scmp.ne.s32.totalorder %s198, %s199
      %p208 = scmp.eq.s32.totalorder %s38, 0
      %p209 = por %p207, %p208
      %p210 = scmp.ne.s32.totalorder %s198, %s199
      %p211 = scmp.eq.s32.totalorder %s39, 1
      %p212 = por %p210, %p211
      %p214 = scmp.ne.s32.totalorder %s199, %s213
      %p215 = scmp.eq.s32.totalorder %s39, 0
      %p216 = por %p214, %p215
      %s218 = sadd.s32 %s217, 1
      %p221 = scmp.eq.s32.totalorder %s33, 1
      %p222 = scmp.ne.s32.totalorder %s217, %s219
      %p223 = scmp.eq.s32.totalorder %s33, 0
      %p224 = por %p222, %p223
      %p225 = scmp.ne.s32.totalorder %s217, %s219
      %p226 = scmp.eq.s32.totalorder %s38, 1
      %p227 = por %p225, %p226
      %p228 = scmp.ne.s32.totalorder %s219, %s220
      %p229 = scmp.eq.s32.totalorder %s38, 0
      %p230 = por %p228, %p229
      %p231 = scmp.ne.s32.totalorder %s219, %s220
      %p232 = scmp.eq.s32.totalorder %s39, 1
      %p233 = por %p231, %p232
      %p235 = scmp.ne.s32.totalorder %s220, %s234
      %p236 = scmp.eq.s32.totalorder %s39, 0
      %p237 = por %p235, %p236
      %s239 = sadd.s32 %s238, 1
      %p242 = scmp.eq.s32.totalorder %s33, 1
      %p243 = scmp.ne.s32.totalorder %s238, %s240
      %p244 = scmp.eq.s32.totalorder %s33, 0
      %p245 = por %p243, %p244
      %p246 = scmp.ne.s32.totalorder %s238, %s240
      %p247 = scmp.eq.s32.totalorder %s38, 1
      %p248 = por %p246, %p247
      %p249 = scmp.ne.s32.totalorder %s240, %s241
      %p250 = scmp.eq.s32.totalorder %s38, 0
      %p251 = por %p249, %p250
      %p252 = scmp.ne.s32.totalorder %s240, %s241
      %p253 = scmp.eq.s32.totalorder %s39, 1
      %p254 = por %p252, %p253
      %p256 = scmp.ne.s32.totalorder %s241, %s255
      %p257 = scmp.eq.s32.totalorder %s39, 0
      %p258 = por %p256, %p257
      %s260 = sadd.s32 %s259, 1
      %p263 = scmp.eq.s32.totalorder %s33, 1
      %p264 = scmp.ne.s32.totalorder %s259, %s261
      %p265 = scmp.eq.s32.totalorder %s33, 0
      %p266 = por %p264, %p265
      %p267 = scmp.ne.s32.totalorder %s259, %s261
      %p268 = scmp.eq.s32.totalorder %s38, 1
      %p269 = por %p267, %p268
      %p270 = scmp.ne.s32.totalorder %s261, %s262
      %p271 = scmp.eq.s32.totalorder %s38, 0
      %p272 = por %p270, %p271
      %p273 = scmp.ne.s32.totalorder %s261, %s262
      %p274 = scmp.eq.s32.totalorder %s39, 1
      %p275 = por %p273, %p274
      %p277 = scmp.ne.s32.totalorder %s262, %s276
      %p278 = scmp.eq.s32.totalorder %s39, 0
      %p279 = por %p277, %p278
      %s281 = sadd.s32 %s280, 1
      %p284 = scmp.eq.s32.totalorder %s33, 1
      %p285 = scmp.ne.s32.totalorder %s280, %s282
      %p286 = scmp.eq.s32.totalorder %s33, 0
      %p287 = por %p285, %p286
      %p288 = scmp.ne.s32.totalorder %s280, %s282
      %p289 = scmp.eq.s32.totalorder %s38, 1
      %p290 = por %p288, %p289
      %p291 = scmp.ne.s32.totalorder %s282, %s283
      %p292 = scmp.eq.s32.totalorder %s38, 0
      %p293 = por %p291, %p292
      %p294 = scmp.ne.s32.totalorder %s282, %s283
      %p295 = scmp.eq.s32.totalorder %s39, 1
      %p296 = por %p294, %p295
      %p298 = scmp.ne.s32.totalorder %s283, %s297
      %p299 = scmp.eq.s32.totalorder %s39, 0
      %p300 = por %p298, %p299
      %s302 = sadd.s32 %s301, 1
      %p305 = scmp.eq.s32.totalorder %s33, 1
      %p306 = scmp.ne.s32.totalorder %s301, %s303
      %p307 = scmp.eq.s32.totalorder %s33, 0
      %p308 = por %p306, %p307
      %p309 = scmp.ne.s32.totalorder %s301, %s303
      %p310 = scmp.eq.s32.totalorder %s38, 1
      %p311 = por %p309, %p310
      %p312 = scmp.ne.s32.totalorder %s303, %s304
      %p313 = scmp.eq.s32.totalorder %s38, 0
      %p314 = por %p312, %p313
      %p315 = scmp.ne.s32.totalorder %s303, %s304
      %p316 = scmp.eq.s32.totalorder %s39, 1
      %p317 = por %p315, %p316
      %p319 = scmp.ne.s32.totalorder %s304, %s318
      %p320 = scmp.eq.s32.totalorder %s39, 0
      %p321 = por %p319, %p320
      %s323 = sadd.s32 %s322, 1
      %p326 = scmp.eq.s32.totalorder %s33, 1
      %p327 = scmp.ne.s32.totalorder %s322, %s324
      %p328 = scmp.eq.s32.totalorder %s33, 0
      %p329 = por %p327, %p328
      %p330 = scmp.ne.s32.totalorder %s322, %s324
      %p331 = scmp.eq.s32.totalorder %s38, 1
      %p332 = por %p330, %p331
      %p333 = scmp.ne.s32.totalorder %s324, %s325
      %p334 = scmp.eq.s32.totalorder %s38, 0
      %p335 = por %p333, %p334
      %p336 = scmp.ne.s32.totalorder %s324, %s325
      %p337 = scmp.eq.s32.totalorder %s39, 1
      %p338 = por %p336, %p337
      %p340 = scmp.ne.s32.totalorder %s325, %s339
      %p341 = scmp.eq.s32.totalorder %s39, 0
      %p342 = por %p340, %p341
      %s343 = ssub.s32 %s40, %s52
      %s344 = ssub.s32 %s41, %s48
      %s345 = sor.u32 %s343, %s344
      %p346 = scmp.eq.s32.totalorder %s345, 0
      %s348 = sadd.s32 %s347, 1
      %s349 = scalar_select %p346, %s347, %s348
      %p352 = pneg %p346
      %p353 = scmp.eq.s32.totalorder %s33, 1
      %p354 = por %p352, %p353
      %p355 = scmp.ne.s32.totalorder %s347, %s350
      %p356 = scmp.eq.s32.totalorder %s33, 0
      %p357 = por %p355, %p356
      %p358 = scmp.ne.s32.totalorder %s347, %s350
      %p359 = scmp.eq.s32.totalorder %s38, 1
      %p360 = por %p358, %p359
      %p361 = scmp.ne.s32.totalorder %s350, %s351
      %p362 = scmp.eq.s32.totalorder %s38, 0
      %p363 = por %p361, %p362
      %p364 = scmp.ne.s32.totalorder %s350, %s351
      %p365 = scmp.eq.s32.totalorder %s39, 1
      %p366 = por %p364, %p365
      %p368 = scmp.ne.s32.totalorder %s351, %s367
      %p369 = scmp.eq.s32.totalorder %s39, 0
      %p370 = por %p368, %p369
      %p371 = scmp.le.s32.totalorder 1, %s33
      %p372 = scmp.lt.s32.totalorder %s33, 3
      %p373 = pnand %p371, %p372
      %p374 = pneg %p373
      // Predicated region
      $region9: #{tpu_custom_call.1} parent=5 // pred_check
        _
      $region10: #{tpu_custom_call.1} parent=5 // pred_check_branch
        %376 = sbr.rel (%p373) target = $region12
      $region11: #{tpu_custom_call.1} parent=5 // pred_region
        %s377 = ssub.s32 %s33, 1
        // Predicated region
        $region13: #{tpu_custom_call.1} parent=11 // pred_check
          %p378 = pneg %p146
        $region14: #{tpu_custom_call.1} parent=11 // pred_check_branch
          %380 = sbr.rel (%p378) target = $region16
        $region15: #{tpu_custom_call.1} parent=11 // pred_region
          %s382 = ssub.s32 2048, 2048
          %383 = vsyncadd [#allocation11], %s382
          %s384 = sshll.u32 [#allocation10], 4
          %s385 = int_to_ptr.vmem [resolvable:$true] %s384
          %390 = dma.hbm_to_vmem [thread:$0]  %s3, 2048, %s385, [#allocation11], 128, 128, 8
        $region16: #{tpu_custom_call.1} parent=11 // pred_fallthru
          _
        // Predicated region
        $region17: #{tpu_custom_call.1} parent=11 // pred_check
          %p391 = pneg %p167
        $region18: #{tpu_custom_call.1} parent=11 // pred_check_branch
          %393 = sbr.rel (%p391) target = $region20
        $region19: #{tpu_custom_call.1} parent=11 // pred_region
          %s395 = ssub.s32 64, 64
          %396 = vsyncadd [#allocation11], %s395
          %s397 = sshll.u32 [#allocation12], 4
          %s398 = int_to_ptr.vmem [resolvable:$true] %s397
          %403 = dma.hbm_to_vmem [thread:$0]  %s4, 64, %s398, [#allocation11], 16, 16, 1
        $region20: #{tpu_custom_call.1} parent=11 // pred_fallthru
          _
        // Predicated region
        $region21: #{tpu_custom_call.1} parent=11 // pred_check
          %p404 = pneg %p188
        $region22: #{tpu_custom_call.1} parent=11 // pred_check_branch
          %406 = sbr.rel (%p404) target = $region24
        $region23: #{tpu_custom_call.1} parent=11 // pred_region
          %s408 = ssub.s32 512, 512
          %409 = vsyncadd [#allocation14], %s408
          %s410 = sshll.u32 [#allocation13], 4
          %s411 = int_to_ptr.vmem [resolvable:$true] %s410
          %416 = dma.hbm_to_vmem [thread:$0]  %s5, 512, %s411, [#allocation14], 128, 128, 8
        $region24: #{tpu_custom_call.1} parent=11 // pred_fallthru
          _
        // Predicated region
        $region25: #{tpu_custom_call.1} parent=11 // pred_check
          %p417 = pneg %p209
        $region26: #{tpu_custom_call.1} parent=11 // pred_check_branch
          %419 = sbr.rel (%p417) target = $region28
        $region27: #{tpu_custom_call.1} parent=11 // pred_region
          %s421 = ssub.s32 512, 512
          %422 = vsyncadd [#allocation14], %s421
          %s423 = sshll.u32 [#allocation15], 4
          %s424 = int_to_ptr.vmem [resolvable:$true] %s423
          %429 = dma.hbm_to_vmem [thread:$0]  %s6, 512, %s424, [#allocation14], 128, 128, 8
        $region28: #{tpu_custom_call.1} parent=11 // pred_fallthru
          _
        // Predicated region
        $region29: #{tpu_custom_call.1} parent=11 // pred_check
          %p430 = pneg %p230
        $region30: #{tpu_custom_call.1} parent=11 // pred_check_branch
          %432 = sbr.rel (%p430) target = $region32
        $region31: #{tpu_custom_call.1} parent=11 // pred_region
          %s434 = ssub.s32 512, 512
          %435 = vsyncadd [#allocation17], %s434
          %s436 = sshll.u32 [#allocation16], 4
          %s437 = int_to_ptr.vmem [resolvable:$true] %s436
          %442 = dma.hbm_to_vmem [thread:$0]  %s7, 512, %s437, [#allocation17], 128, 128, 8
        $region32: #{tpu_custom_call.1} parent=11 // pred_fallthru
          _
        // Predicated region
        $region33: #{tpu_custom_call.1} parent=11 // pred_check
          %p443 = pneg %p251
        $region34: #{tpu_custom_call.1} parent=11 // pred_check_branch
          %445 = sbr.rel (%p443) target = $region36
        $region35: #{tpu_custom_call.1} parent=11 // pred_region
          %s447 = ssub.s32 512, 512
          %448 = vsyncadd [#allocation17], %s447
          %s449 = sshll.u32 [#allocation18], 4
          %s450 = int_to_ptr.vmem [resolvable:$true] %s449
          %455 = dma.hbm_to_vmem [thread:$0]  %s8, 512, %s450, [#allocation17], 128, 128, 8
        $region36: #{tpu_custom_call.1} parent=11 // pred_fallthru
          _
        // Predicated region
        $region37: #{tpu_custom_call.1} parent=11 // pred_check
          %p456 = pneg %p272
        $region38: #{tpu_custom_call.1} parent=11 // pred_check_branch
          %458 = sbr.rel (%p456) target = $region40
        $region39: #{tpu_custom_call.1} parent=11 // pred_region
          %s460 = ssub.s32 512, 512
          %461 = vsyncadd [#allocation20], %s460
          %s462 = sshll.u32 [#allocation19], 4
          %s463 = int_to_ptr.vmem [resolvable:$true] %s462
          %468 = dma.hbm_to_vmem [thread:$0]  %s9, 512, %s463, [#allocation20], 128, 128, 8
        $region40: #{tpu_custom_call.1} parent=11 // pred_fallthru
          _
        // Predicated region
        $region41: #{tpu_custom_call.1} parent=11 // pred_check
          %p469 = pneg %p293
        $region42: #{tpu_custom_call.1} parent=11 // pred_check_branch
          %471 = sbr.rel (%p469) target = $region44
        $region43: #{tpu_custom_call.1} parent=11 // pred_region
          %s473 = ssub.s32 16, 16
          %474 = vsyncadd [#allocation20], %s473
          %s476 = sshll.u32 [#allocation21], 4
          %s477 = int_to_ptr.vmem [resolvable:$true] %s476
          %479 = dma.hbm_to_vmem [thread:$0]  %s10, 16, %s477, [#allocation20]
        $region44: #{tpu_custom_call.1} parent=11 // pred_fallthru
          _
        // Predicated region
        $region45: #{tpu_custom_call.1} parent=11 // pred_check
          %p480 = pneg %p314
        $region46: #{tpu_custom_call.1} parent=11 // pred_check_branch
          %482 = sbr.rel (%p480) target = $region48
        $region47: #{tpu_custom_call.1} parent=11 // pred_region
          %s484 = ssub.s32 16, 16
          %485 = vsyncadd [#allocation23], %s484
          %s487 = sshll.u32 [#allocation22], 4
          %s488 = int_to_ptr.vmem [resolvable:$true] %s487
          %490 = dma.hbm_to_vmem [thread:$0]  %s11, 16, %s488, [#allocation23]
        $region48: #{tpu_custom_call.1} parent=11 // pred_fallthru
          _
        // Predicated region
        $region49: #{tpu_custom_call.1} parent=11 // pred_check
          %p491 = pneg %p335
        $region50: #{tpu_custom_call.1} parent=11 // pred_check_branch
          %493 = sbr.rel (%p491) target = $region52
        $region51: #{tpu_custom_call.1} parent=11 // pred_region
          %s495 = ssub.s32 16, 16
          %496 = vsyncadd [#allocation23], %s495
          %s498 = sshll.u32 [#allocation24], 4
          %s499 = int_to_ptr.vmem [resolvable:$true] %s498
          %501 = dma.hbm_to_vmem [thread:$0]  %s12, 16, %s499, [#allocation23]
        $region52: #{tpu_custom_call.1} parent=11 // pred_fallthru
          _
      $region12: #{tpu_custom_call.1} parent=5 // pred_fallthru
        _
      %p502 = scmp.lt.s32.totalorder %s33, 2
      // Predicated region
      $region53: #{tpu_custom_call.1} parent=5 // pred_check
        %p503 = pneg %p502
      $region54: #{tpu_custom_call.1} parent=5 // pred_check_branch
        %505 = sbr.rel (%p503) target = $region56
      $region55: #{tpu_custom_call.1} parent=5 // pred_region
        // Predicated region
        $region57: #{tpu_custom_call.1} parent=55 // pred_check
          %p506 = pneg %p67
        $region58: #{tpu_custom_call.1} parent=55 // pred_check_branch
          %508 = sbr.rel (%p506) target = $region60
        $region59: #{tpu_custom_call.1} parent=55 // pred_region
          %s509 = sand.u32 %s57, 1
          %s510 = scalar_lea.sflag [#allocation5], %s509
          %s511 = sand.u32 %s57, 1
          %s512 = smul.addr %s511, 8
          %s513 = scalar_lea.vmem [#allocation4], %s512
          %s515 = ssub.s32 128, 128
          %516 = vsyncadd %s510, %s515
          %s517 = sadd.s32 %s41, %s40
          %s518 = smul.addr %s517, 128
          %s519 = scalar_lea.hbm %s0, %s518
          %s521 = sshll.u32 %s513, 4
          %s522 = int_to_ptr.vmem [resolvable:$true] %s521
          %524 = dma.hbm_to_vmem [thread:$0]  %s519, 128, %s522, %s510
        $region60: #{tpu_custom_call.1} parent=55 // pred_fallthru
          _
        // Predicated region
        $region61: #{tpu_custom_call.1} parent=55 // pred_check
          %p525 = pneg %p93
        $region62: #{tpu_custom_call.1} parent=55 // pred_check_branch
          %527 = sbr.rel (%p525) target = $region64
        $region63: #{tpu_custom_call.1} parent=55 // pred_region
          %s528 = sand.u32 %s33, 1
          %s529 = scalar_lea.sflag [#allocation8], %s528
          %s530 = sand.u32 %s83, 1
          %s531 = smul.addr %s530, 8
          %s532 = scalar_lea.vmem [#allocation7], %s531
          %s534 = ssub.s32 128, 128
          %535 = vsyncadd %s529, %s534
          %s536 = smul.addr %s40, 128
          %s537 = scalar_lea.hbm %s1, %s536
          %s539 = sshll.u32 %s532, 4
          %s540 = int_to_ptr.vmem [resolvable:$true] %s539
          %542 = dma.hbm_to_vmem [thread:$0]  %s537, 128, %s540, %s529
        $region64: #{tpu_custom_call.1} parent=55 // pred_fallthru
          _
        // Predicated region
        $region65: #{tpu_custom_call.1} parent=55 // pred_check
          %p543 = pneg %p119
        $region66: #{tpu_custom_call.1} parent=55 // pred_check_branch
          %545 = sbr.rel (%p543) target = $region68
        $region67: #{tpu_custom_call.1} parent=55 // pred_region
          %s546 = sand.u32 %s33, 1
          %s547 = scalar_lea.sflag [#allocation8], %s546
          %s548 = sand.u32 %s109, 1
          %s549 = scalar_lea.vmem [#allocation9], %s548
          %s551 = ssub.s32 16, 16
          %552 = vsyncadd %s547, %s551
          %s553 = smul.addr %s40, 16
          %s554 = scalar_lea.hbm %s2, %s553
          %s556 = sshll.u32 %s549, 4
          %s557 = int_to_ptr.vmem [resolvable:$true] %s556
          %559 = dma.hbm_to_vmem [thread:$0]  %s554, 16, %s557, %s547
        $region68: #{tpu_custom_call.1} parent=55 // pred_fallthru
          _
      $region56: #{tpu_custom_call.1} parent=5 // pred_fallthru
        _
      %p560 = scmp.le.s32.totalorder 1, %s33
      %p561 = scmp.lt.s32.totalorder %s33, 3
      %p562 = pnand %p560, %p561
      %p563 = pneg %p562
      // Predicated region
      $region69: #{tpu_custom_call.1} parent=5 // pred_check
        _
      $region70: #{tpu_custom_call.1} parent=5 // pred_check_branch
        %565 = sbr.rel (%p562) target = $region72
      $region71: #{tpu_custom_call.1} parent=5 // pred_region
        %s566 = ssub.s32 %s33, 1
        %s567 = sand.u32 %s60, 1
        %s568 = scalar_lea.sflag [#allocation5], %s567
        %s569 = sand.u32 %s60, 1
        %s570 = smul.addr %s569, 8
        %s571 = scalar_lea.vmem [#allocation4], %s570
        // Predicated region
        $region73: #{tpu_custom_call.1} parent=71 // pred_check
          %p572 = pneg %p73
        $region74: #{tpu_custom_call.1} parent=71 // pred_check_branch
          %574 = sbr.rel (%p572) target = $region76
        $region75: #{tpu_custom_call.1} parent=71 // pred_region
          %575 = dma.done %s568, 128
        $region76: #{tpu_custom_call.1} parent=71 // pred_fallthru
          _
        %s576 = sand.u32 %s38, 1
        %s577 = scalar_lea.sflag [#allocation8], %s576
        %s578 = sand.u32 %s86, 1
        %s579 = smul.addr %s578, 8
        %s580 = scalar_lea.vmem [#allocation7], %s579
        // Predicated region
        $region77: #{tpu_custom_call.1} parent=71 // pred_check
          %p581 = pneg %p99
        $region78: #{tpu_custom_call.1} parent=71 // pred_check_branch
          %583 = sbr.rel (%p581) target = $region80
        $region79: #{tpu_custom_call.1} parent=71 // pred_region
          %584 = dma.done %s577, 128
        $region80: #{tpu_custom_call.1} parent=71 // pred_fallthru
          _
        %s585 = sand.u32 %s38, 1
        %s586 = scalar_lea.sflag [#allocation8], %s585
        %s587 = sand.u32 %s112, 1
        %s588 = scalar_lea.vmem [#allocation9], %s587
        // Predicated region
        $region81: #{tpu_custom_call.1} parent=71 // pred_check
          %p589 = pneg %p125
        $region82: #{tpu_custom_call.1} parent=71 // pred_check_branch
          %591 = sbr.rel (%p589) target = $region84
        $region83: #{tpu_custom_call.1} parent=71 // pred_region
          %592 = dma.done %s586, 16
        $region84: #{tpu_custom_call.1} parent=71 // pred_fallthru
          _
        // Predicated region
        $region85: #{tpu_custom_call.1} parent=71 // pred_check
          %p593 = pneg %p146
        $region86: #{tpu_custom_call.1} parent=71 // pred_check_branch
          %595 = sbr.rel (%p593) target = $region88
        $region87: #{tpu_custom_call.1} parent=71 // pred_region
          %596 = dma.done [#allocation11], 2048
        $region88: #{tpu_custom_call.1} parent=71 // pred_fallthru
          _
        // Predicated region
        $region89: #{tpu_custom_call.1} parent=71 // pred_check
          %p597 = pneg %p167
        $region90: #{tpu_custom_call.1} parent=71 // pred_check_branch
          %599 = sbr.rel (%p597) target = $region92
        $region91: #{tpu_custom_call.1} parent=71 // pred_region
          %600 = dma.done [#allocation11], 64
        $region92: #{tpu_custom_call.1} parent=71 // pred_fallthru
          _
        // Predicated region
        $region93: #{tpu_custom_call.1} parent=71 // pred_check
          %p601 = pneg %p188
        $region94: #{tpu_custom_call.1} parent=71 // pred_check_branch
          %603 = sbr.rel (%p601) target = $region96
        $region95: #{tpu_custom_call.1} parent=71 // pred_region
          %604 = dma.done [#allocation14], 512
        $region96: #{tpu_custom_call.1} parent=71 // pred_fallthru
          _
        // Predicated region
        $region97: #{tpu_custom_call.1} parent=71 // pred_check
          %p605 = pneg %p209
        $region98: #{tpu_custom_call.1} parent=71 // pred_check_branch
          %607 = sbr.rel (%p605) target = $region100
        $region99: #{tpu_custom_call.1} parent=71 // pred_region
          %608 = dma.done [#allocation14], 512
        $region100: #{tpu_custom_call.1} parent=71 // pred_fallthru
          _
        // Predicated region
        $region101: #{tpu_custom_call.1} parent=71 // pred_check
          %p609 = pneg %p230
        $region102: #{tpu_custom_call.1} parent=71 // pred_check_branch
          %611 = sbr.rel (%p609) target = $region104
        $region103: #{tpu_custom_call.1} parent=71 // pred_region
          %612 = dma.done [#allocation17], 512
        $region104: #{tpu_custom_call.1} parent=71 // pred_fallthru
          _
        // Predicated region
        $region105: #{tpu_custom_call.1} parent=71 // pred_check
          %p613 = pneg %p251
        $region106: #{tpu_custom_call.1} parent=71 // pred_check_branch
          %615 = sbr.rel (%p613) target = $region108
        $region107: #{tpu_custom_call.1} parent=71 // pred_region
          %616 = dma.done [#allocation17], 512
        $region108: #{tpu_custom_call.1} parent=71 // pred_fallthru
          _
        // Predicated region
        $region109: #{tpu_custom_call.1} parent=71 // pred_check
          %p617 = pneg %p272
        $region110: #{tpu_custom_call.1} parent=71 // pred_check_branch
          %619 = sbr.rel (%p617) target = $region112
        $region111: #{tpu_custom_call.1} parent=71 // pred_region
          %620 = dma.done [#allocation20], 512
        $region112: #{tpu_custom_call.1} parent=71 // pred_fallthru
          _
        // Predicated region
        $region113: #{tpu_custom_call.1} parent=71 // pred_check
          %p621 = pneg %p293
        $region114: #{tpu_custom_call.1} parent=71 // pred_check_branch
          %623 = sbr.rel (%p621) target = $region116
        $region115: #{tpu_custom_call.1} parent=71 // pred_region
          %624 = dma.done [#allocation20], 16
        $region116: #{tpu_custom_call.1} parent=71 // pred_fallthru
          _
        // Predicated region
        $region117: #{tpu_custom_call.1} parent=71 // pred_check
          %p625 = pneg %p314
        $region118: #{tpu_custom_call.1} parent=71 // pred_check_branch
          %627 = sbr.rel (%p625) target = $region120
        $region119: #{tpu_custom_call.1} parent=71 // pred_region
          %628 = dma.done [#allocation23], 16
        $region120: #{tpu_custom_call.1} parent=71 // pred_fallthru
          _
        // Predicated region
        $region121: #{tpu_custom_call.1} parent=71 // pred_check
          %p629 = pneg %p335
        $region122: #{tpu_custom_call.1} parent=71 // pred_check_branch
          %631 = sbr.rel (%p629) target = $region124
        $region123: #{tpu_custom_call.1} parent=71 // pred_region
          %632 = dma.done [#allocation23], 16
        $region124: #{tpu_custom_call.1} parent=71 // pred_fallthru
          _
        %s633 = sand.u32 %s60, 1
        %s634 = scalar_lea.sflag [#allocation5], %s633
        %s635 = sand.u32 %s60, 1
        %s636 = smul.addr %s635, 8
        %s637 = scalar_lea.vmem [#allocation4], %s636
        %p638 = pneg %p73
        %p639 = pneg %p70
        %s640 = sand.u32 %s38, 1
        %s641 = scalar_lea.sflag [#allocation8], %s640
        %s642 = sand.u32 %s86, 1
        %s643 = smul.addr %s642, 8
        %s644 = scalar_lea.vmem [#allocation7], %s643
        %p645 = pneg %p99
        %p646 = pneg %p96
        %s647 = sand.u32 %s38, 1
        %s648 = scalar_lea.sflag [#allocation8], %s647
        %s649 = sand.u32 %s112, 1
        %s650 = scalar_lea.vmem [#allocation9], %s649
        %p651 = pneg %p125
        %p652 = pneg %p122
        %p653 = pneg %p146
        %p654 = pneg %p143
        %p655 = pneg %p167
        %p656 = pneg %p164
        %p657 = pneg %p188
        %p658 = pneg %p185
        %p659 = pneg %p209
        %p660 = pneg %p206
        %p661 = pneg %p230
        %p662 = pneg %p227
        %p663 = pneg %p251
        %p664 = pneg %p248
        %p665 = pneg %p272
        %p666 = pneg %p269
        %p667 = pneg %p293
        %p668 = pneg %p290
        %p669 = pneg %p314
        %p670 = pneg %p311
        %p671 = pneg %p335
        %p672 = pneg %p332
        %p673 = pneg %p363
        %p674 = pneg %p360
        %s675 = sand.u32 %s350, 1
        %s676 = scalar_lea.sflag [#allocation6], %s675
        %s677 = sand.u32 %s350, 1
        %s678 = smul.addr %s677, 8
        %s679 = scalar_lea.vmem [#allocation25], %s678
        %p680 = scmp.eq.s32.totalorder %s43, 0
        // Predicated region
        $region125: #{tpu_custom_call.1} parent=71 // pred_check
          %p681 = pneg %p680
        $region126: #{tpu_custom_call.1} parent=71 // pred_check_branch
          %683 = sbr.rel (%p681) target = $region128
        $region127: #{tpu_custom_call.1} parent=71 // pred_region
          %v684 = vld [vmem:[%s580] sm:$0xff]
          %v685 = vld [vmem:[#allocation13] sm:$0xff]
          %v686 = vld [vmem:[#allocation13 + $0x8] sm:$0xff]
          %v687 = vld [vmem:[#allocation13 + $0x10] sm:$0xff]
          %v688 = vld [vmem:[#allocation13 + $0x18] sm:$0xff]
          %vm689 = vcmask 261120
          %v691 = vsel %vm689, %v685, 0
          %v694 = vsel %vm689, %v686, 0
          %v697 = vsel %vm689, %v687, 0
          %v700 = vsel %vm689, %v688, 0
          %v703 = vsel %vm689, %v684, 0
          %705 = vmatprep.subr.mxu0 0.0
          %706 = vmatpush1.xpose.msra.mxu0 %v703
          %707 = vmatprep.subr.mxu0 0.0
          %708 = vmatpush1.xpose.msra.mxu0 0.0
          %709 = vmatprep.subr.mxu0 0.0
          %710 = vmatpush1.xpose.msra.mxu0 0.0
          %711 = vmatprep.subr.mxu0 0.0
          %712 = vmatpush1.xpose.msra.mxu0 0.0
          %713 = vmatprep.subr.mxu0 0.0
          %714 = vmatpush1.xpose.msra.mxu0 0.0
          %715 = vmatprep.subr.mxu0 0.0
          %716 = vmatpush1.xpose.msra.mxu0 0.0
          %717 = vmatprep.subr.mxu0 0.0
          %718 = vmatpush1.xpose.msra.mxu0 0.0
          %719 = vmatprep.subr.mxu0 0.0
          %720 = vmatpush1.xpose.msra.mxu0 0.0
          %721 = vmatprep.subr.mxu0 0.0
          %722 = vmatpush1.xpose.msra.mxu0 0.0
          %723 = vmatprep.subr.mxu0 0.0
          %724 = vmatpush1.xpose.msra.mxu0 0.0
          %725 = vmatprep.subr.mxu0 0.0
          %726 = vmatpush1.xpose.msra.mxu0 0.0
          %727 = vmatprep.subr.mxu0 0.0
          %728 = vmatpush1.xpose.msra.mxu0 0.0
          %729 = vmatprep.subr.mxu0 0.0
          %730 = vmatpush1.xpose.msra.mxu0 0.0
          %731 = vmatprep.subr.mxu0 0.0
          %732 = vmatpush1.xpose.msra.mxu0 0.0
          %733 = vmatprep.subr.mxu0 0.0
          %734 = vmatpush1.xpose.msra.mxu0 0.0
          %735 = vmatprep.subr.mxu0 0.0
          %736 = vmatpush1.xpose.msra.mxu0 0.0
          %737 = vmatprep.subr.mxu0 0.0
          %738 = vmatpush1.xpose.msra.mxu0 0.0
          %739 = vmatprep.subr.mxu0 0.0
          %740 = vmatpush1.xpose.msra.mxu0 0.0
          %741 = vmatprep.subr.mxu0 0.0
          %742 = vmatpush1.xpose.msra.mxu0 0.0
          %743 = vmatprep.subr.mxu0 0.0
          %744 = vmatpush1.xpose.msra.mxu0 0.0
          %745 = vmatprep.subr.mxu0 0.0
          %746 = vmatpush1.xpose.msra.mxu0 0.0
          %747 = vmatprep.subr.mxu0 0.0
          %748 = vmatpush1.xpose.msra.mxu0 0.0
          %749 = vmatprep.subr.mxu0 0.0
          %750 = vmatpush1.xpose.msra.mxu0 0.0
          %751 = vmatprep.subr.mxu0 0.0
          %752 = vmatpush1.xpose.msra.mxu0 0.0
          %753 = vmatprep.subr.mxu0 0.0
          %754 = vmatpush1.xpose.msra.mxu0 0.0
          %755 = vmatprep.subr.mxu0 0.0
          %756 = vmatpush1.xpose.msra.mxu0 0.0
          %757 = vmatprep.subr.mxu0 0.0
          %758 = vmatpush1.xpose.msra.mxu0 0.0
          %759 = vmatprep.subr.mxu0 0.0
          %760 = vmatpush1.xpose.msra.mxu0 0.0
          %761 = vmatprep.subr.mxu0 0.0
          %762 = vmatpush1.xpose.msra.mxu0 0.0
          %763 = vmatprep.subr.mxu0 0.0
          %764 = vmatpush1.xpose.msra.mxu0 0.0
          %765 = vmatprep.subr.mxu0 0.0
          %766 = vmatpush1.xpose.msra.mxu0 0.0
          %767 = vmatprep.subr.mxu0 0.0
          %768 = vmatpush1.xpose.msra.mxu0 0.0
          %769 = vmatprep.mubr.f32.mxu0 0.0
          %770 = vmatmul.mubr.f32.gmra.mrb[0].mxu0 %v691
          %v771 = vpop.f32.mrb[0].mxu0
          %v772 = vadd.f32 0.0, %v771
          %v773 = vpop.f32.mrb[0].mxu0
          %774 = vmatprep.mubr.f32.mxu0 0.0
          %775 = vmatmul.mubr.f32.gmra.mrb[0].mxu0 %v694
          %v776 = vpop.f32.mrb[0].mxu0
          %v777 = vadd.f32 0.0, %v776
          %v778 = vpop.f32.mrb[0].mxu0
          %779 = vmatprep.mubr.f32.mxu0 0.0
          %780 = vmatmul.mubr.f32.gmra.mrb[0].mxu0 %v697
          %v781 = vpop.f32.mrb[0].mxu0
          %v782 = vadd.f32 0.0, %v781
          %v783 = vpop.f32.mrb[0].mxu0
          %784 = vmatprep.mubr.f32.mxu0 0.0
          %785 = vmatmul.mubr.f32.gmra.mrb[0].mxu0 %v700
          %v786 = vpop.f32.mrb[0].mxu0
          %v787 = vadd.f32 0.0, %v786
          %v788 = vpop.f32.mrb[0].mxu0
          %789 = vdwg.mxu0
          %v790 = vld [vmem:[#allocation15] sm:$0xff]
          %v791 = vld [vmem:[#allocation15 + $0x8] sm:$0xff]
          %v792 = vld [vmem:[#allocation15 + $0x10] sm:$0xff]
          %v793 = vld [vmem:[#allocation15 + $0x18] sm:$0xff]
          %795 = vset.pattern.permute.xlu0 0
          %796 = vperm.xlu0 %795, %v790
          %v797 = vpop.permute.xlu0 %796
          %800 = vset.pattern.permute.xlu0 0
          %801 = vperm.xlu0 %800, %v791
          %v802 = vpop.permute.xlu0 %801
          %805 = vset.pattern.permute.xlu0 0
          %806 = vperm.xlu0 %805, %v792
          %v807 = vpop.permute.xlu0 %806
          %810 = vset.pattern.permute.xlu0 0
          %811 = vperm.xlu0 %810, %v793
          %v812 = vpop.permute.xlu0 %811
          %v814 = vadd.f32 %v772, %v797
          %v815 = vadd.f32 %v777, %v802
          %v816 = vadd.f32 %v782, %v807
          %v817 = vadd.f32 %v787, %v812
          %vm818 = vcmask 64512
          %819 = vst.msk [vmem:[#allocation2] sm:$0xff] %vm818, %v814
          %820 = vst.msk [vmem:[#allocation2 + $0x8] sm:$0xff] %vm818, %v815
          %821 = vst.msk [vmem:[#allocation2 + $0x10] sm:$0xff] %vm818, %v816
          %822 = vst.msk [vmem:[#allocation2 + $0x18] sm:$0xff] %vm818, %v817
          %v823 = vld [vmem:[#allocation16] sm:$0xff]
          %v824 = vld [vmem:[#allocation16 + $0x8] sm:$0xff]
          %v825 = vld [vmem:[#allocation16 + $0x10] sm:$0xff]
          %v826 = vld [vmem:[#allocation16 + $0x18] sm:$0xff]
          %v828 = vsel %vm689, %v823, 0
          %v831 = vsel %vm689, %v824, 0
          %v834 = vsel %vm689, %v825, 0
          %v837 = vsel %vm689, %v826, 0
          %839 = vmatprep.subr.mxu0 0.0
          %840 = vmatpush1.xpose.msra.mxu0 %v703
          %841 = vmatprep.subr.mxu0 0.0
          %842 = vmatpush1.xpose.msra.mxu0 0.0
          %843 = vmatprep.subr.mxu0 0.0
          %844 = vmatpush1.xpose.msra.mxu0 0.0
          %845 = vmatprep.subr.mxu0 0.0
          %846 = vmatpush1.xpose.msra.mxu0 0.0
          %847 = vmatprep.subr.mxu0 0.0
          %848 = vmatpush1.xpose.msra.mxu0 0.0
          %849 = vmatprep.subr.mxu0 0.0
          %850 = vmatpush1.xpose.msra.mxu0 0.0
          %851 = vmatprep.subr.mxu0 0.0
          %852 = vmatpush1.xpose.msra.mxu0 0.0
          %853 = vmatprep.subr.mxu0 0.0
          %854 = vmatpush1.xpose.msra.mxu0 0.0
          %855 = vmatprep.subr.mxu0 0.0
          %856 = vmatpush1.xpose.msra.mxu0 0.0
          %857 = vmatprep.subr.mxu0 0.0
          %858 = vmatpush1.xpose.msra.mxu0 0.0
          %859 = vmatprep.subr.mxu0 0.0
          %860 = vmatpush1.xpose.msra.mxu0 0.0
          %861 = vmatprep.subr.mxu0 0.0
          %862 = vmatpush1.xpose.msra.mxu0 0.0
          %863 = vmatprep.subr.mxu0 0.0
          %864 = vmatpush1.xpose.msra.mxu0 0.0
          %865 = vmatprep.subr.mxu0 0.0
          %866 = vmatpush1.xpose.msra.mxu0 0.0
          %867 = vmatprep.subr.mxu0 0.0
          %868 = vmatpush1.xpose.msra.mxu0 0.0
          %869 = vmatprep.subr.mxu0 0.0
          %870 = vmatpush1.xpose.msra.mxu0 0.0
          %871 = vmatprep.subr.mxu0 0.0
          %872 = vmatpush1.xpose.msra.mxu0 0.0
          %873 = vmatprep.subr.mxu0 0.0
          %874 = vmatpush1.xpose.msra.mxu0 0.0
          %875 = vmatprep.subr.mxu0 0.0
          %876 = vmatpush1.xpose.msra.mxu0 0.0
          %877 = vmatprep.subr.mxu0 0.0
          %878 = vmatpush1.xpose.msra.mxu0 0.0
          %879 = vmatprep.subr.mxu0 0.0
          %880 = vmatpush1.xpose.msra.mxu0 0.0
          %881 = vmatprep.subr.mxu0 0.0
          %882 = vmatpush1.xpose.msra.mxu0 0.0
          %883 = vmatprep.subr.mxu0 0.0
          %884 = vmatpush1.xpose.msra.mxu0 0.0
          %885 = vmatprep.subr.mxu0 0.0
          %886 = vmatpush1.xpose.msra.mxu0 0.0
          %887 = vmatprep.subr.mxu0 0.0
          %888 = vmatpush1.xpose.msra.mxu0 0.0
          %889 = vmatprep.subr.mxu0 0.0
          %890 = vmatpush1.xpose.msra.mxu0 0.0
          %891 = vmatprep.subr.mxu0 0.0
          %892 = vmatpush1.xpose.msra.mxu0 0.0
          %893 = vmatprep.subr.mxu0 0.0
          %894 = vmatpush1.xpose.msra.mxu0 0.0
          %895 = vmatprep.subr.mxu0 0.0
          %896 = vmatpush1.xpose.msra.mxu0 0.0
          %897 = vmatprep.subr.mxu0 0.0
          %898 = vmatpush1.xpose.msra.mxu0 0.0
          %899 = vmatprep.subr.mxu0 0.0
          %900 = vmatpush1.xpose.msra.mxu0 0.0
          %901 = vmatprep.subr.mxu0 0.0
          %902 = vmatpush1.xpose.msra.mxu0 0.0
          %903 = vmatprep.mubr.f32.mxu0 0.0
          %904 = vmatmul.mubr.f32.gmra.mrb[0].mxu0 %v828
          %v905 = vpop.f32.mrb[0].mxu0
          %v906 = vadd.f32 0.0, %v905
          %v907 = vpop.f32.mrb[0].mxu0
          %908 = vmatprep.mubr.f32.mxu0 0.0
          %909 = vmatmul.mubr.f32.gmra.mrb[0].mxu0 %v831
          %v910 = vpop.f32.mrb[0].mxu0
          %v911 = vadd.f32 0.0, %v910
          %v912 = vpop.f32.mrb[0].mxu0
          %913 = vmatprep.mubr.f32.mxu0 0.0
          %914 = vmatmul.mubr.f32.gmra.mrb[0].mxu0 %v834
          %v915 = vpop.f32.mrb[0].mxu0
          %v916 = vadd.f32 0.0, %v915
          %v917 = vpop.f32.mrb[0].mxu0
          %918 = vmatprep.mubr.f32.mxu0 0.0
          %919 = vmatmul.mubr.f32.gmra.mrb[0].mxu0 %v837
          %v920 = vpop.f32.mrb[0].mxu0
          %v921 = vadd.f32 0.0, %v920
          %v922 = vpop.f32.mrb[0].mxu0
          %923 = vdwg.mxu0
          %v924 = vld [vmem:[#allocation18] sm:$0xff]
          %v925 = vld [vmem:[#allocation18 + $0x8] sm:$0xff]
          %v926 = vld [vmem:[#allocation18 + $0x10] sm:$0xff]
          %v927 = vld [vmem:[#allocation18 + $0x18] sm:$0xff]
          %929 = vset.pattern.permute.xlu0 0
          %930 = vperm.xlu0 %929, %v924
          %v931 = vpop.permute.xlu0 %930
          %934 = vset.pattern.permute.xlu0 0
          %935 = vperm.xlu0 %934, %v925
          %v936 = vpop.permute.xlu0 %935
          %939 = vset.pattern.permute.xlu0 0
          %940 = vperm.xlu0 %939, %v926
          %v941 = vpop.permute.xlu0 %940
          %944 = vset.pattern.permute.xlu0 0
          %945 = vperm.xlu0 %944, %v927
          %v946 = vpop.permute.xlu0 %945
          %v948 = vadd.f32 %v906, %v931
          %v949 = vadd.f32 %v911, %v936
          %v950 = vadd.f32 %v916, %v941
          %v951 = vadd.f32 %v921, %v946
          %952 = vst.msk [vmem:[#allocation3] sm:$0xff] %vm818, %v948
          %953 = vst.msk [vmem:[#allocation3 + $0x8] sm:$0xff] %vm818, %v949
          %954 = vst.msk [vmem:[#allocation3 + $0x10] sm:$0xff] %vm818, %v950
          %955 = vst.msk [vmem:[#allocation3 + $0x18] sm:$0xff] %vm818, %v951
        $region128: #{tpu_custom_call.1} parent=71 // pred_fallthru
          _
        %v956 = vld [vmem:[%s571] sm:$0xff]
        %v957 = vld [vmem:[%s588] sm:$0x1]
        loop: start=0, step=1, limit=4
        $region129: #{tpu_custom_call.1} parent=71 // loop_pre_header
          _
        $region130: #{tpu_custom_call.1} parent=71 // loop_header
          %s959 = sphi 0, %s963
          %p960 = scmp.ge.s32.totalorder %s959, 4
          %v964 = vphi 0.0, %v1300
        $region131: #{tpu_custom_call.1} parent=71 // loop_header_branch
          %962 = sbr.rel (%p960) target = $region135
        $region132: #{tpu_custom_call.1} parent=71 // loop_body
          %s965 = smul.u32 %s959, 32
          %s966 = scalar_lea.vmem [#allocation10], %s965
          %v967 = vld [vmem:[%s966] sm:$0xff]
          %v968 = vld [vmem:[%s966 + $0x8] sm:$0xff]
          %v969 = vld [vmem:[%s966 + $0x10] sm:$0xff]
          %v970 = vld [vmem:[%s966 + $0x18] sm:$0xff]
          %s971 = scalar_lea.vmem [#allocation12], %s959
          %v972 = vld [vmem:[%s971] sm:$0x1]
          %v974 = vlaneseq
          %v975 = vshrl.u32 %v974, 7
          %v976 = vsub.s32 0, %v975
          %v977 = vrot.slane %v972, %v976
          %vm979 = vcmask 261120
          %v981 = vsel %vm979, %v956, 0
          %983 = vmatprep.subr.mxu0 0.0
          %984 = vmatpush1.msra.mxu0 %v967
          %985 = vmatprep.subr.mxu0 0.0
          %986 = vmatpush1.msra.mxu0 %v968
          %987 = vmatprep.subr.mxu0 0.0
          %988 = vmatpush1.msra.mxu0 %v969
          %989 = vmatprep.subr.mxu0 0.0
          %990 = vmatpush1.msra.mxu0 %v970
          %991 = vmatprep.subr.mxu0 0.0
          %992 = vmatpush1.msra.mxu0 0.0
          %993 = vmatprep.subr.mxu0 0.0
          %994 = vmatpush1.msra.mxu0 0.0
          %995 = vmatprep.subr.mxu0 0.0
          %996 = vmatpush1.msra.mxu0 0.0
          %997 = vmatprep.subr.mxu0 0.0
          %998 = vmatpush1.msra.mxu0 0.0
          %999 = vmatprep.subr.mxu0 0.0
          %1000 = vmatpush1.msra.mxu0 0.0
          %1001 = vmatprep.subr.mxu0 0.0
          %1002 = vmatpush1.msra.mxu0 0.0
          %1003 = vmatprep.subr.mxu0 0.0
          %1004 = vmatpush1.msra.mxu0 0.0
          %1005 = vmatprep.subr.mxu0 0.0
          %1006 = vmatpush1.msra.mxu0 0.0
          %1007 = vmatprep.subr.mxu0 0.0
          %1008 = vmatpush1.msra.mxu0 0.0
          %1009 = vmatprep.subr.mxu0 0.0
          %1010 = vmatpush1.msra.mxu0 0.0
          %1011 = vmatprep.subr.mxu0 0.0
          %1012 = vmatpush1.msra.mxu0 0.0
          %1013 = vmatprep.subr.mxu0 0.0
          %1014 = vmatpush1.msra.mxu0 0.0
          %1015 = vmatprep.subr.mxu0 0.0
          %1016 = vmatpush1.msra.mxu0 0.0
          %1017 = vmatprep.subr.mxu0 0.0
          %1018 = vmatpush1.msra.mxu0 0.0
          %1019 = vmatprep.subr.mxu0 0.0
          %1020 = vmatpush1.msra.mxu0 0.0
          %1021 = vmatprep.subr.mxu0 0.0
          %1022 = vmatpush1.msra.mxu0 0.0
          %1023 = vmatprep.subr.mxu0 0.0
          %1024 = vmatpush1.msra.mxu0 0.0
          %1025 = vmatprep.subr.mxu0 0.0
          %1026 = vmatpush1.msra.mxu0 0.0
          %1027 = vmatprep.subr.mxu0 0.0
          %1028 = vmatpush1.msra.mxu0 0.0
          %1029 = vmatprep.subr.mxu0 0.0
          %1030 = vmatpush1.msra.mxu0 0.0
          %1031 = vmatprep.subr.mxu0 0.0
          %1032 = vmatpush1.msra.mxu0 0.0
          %1033 = vmatprep.subr.mxu0 0.0
          %1034 = vmatpush1.msra.mxu0 0.0
          %1035 = vmatprep.subr.mxu0 0.0
          %1036 = vmatpush1.msra.mxu0 0.0
          %1037 = vmatprep.subr.mxu0 0.0
          %1038 = vmatpush1.msra.mxu0 0.0
          %1039 = vmatprep.subr.mxu0 0.0
          %1040 = vmatpush1.msra.mxu0 0.0
          %1041 = vmatprep.subr.mxu0 0.0
          %1042 = vmatpush1.msra.mxu0 0.0
          %1043 = vmatprep.subr.mxu0 0.0
          %1044 = vmatpush1.msra.mxu0 0.0
          %1045 = vmatprep.subr.mxu0 0.0
          %1046 = vmatpush1.msra.mxu0 0.0
          %1047 = vmatprep.mubr.f32.mxu0 0.0
          %1048 = vmatmul.mubr.f32.gmra.mrb[0].mxu0 %v981
          %v1049 = vpop.f32.mrb[0].mxu0
          %v1050 = vadd.f32 %v977, %v1049
          %v1051 = vpop.f32.mrb[0].mxu0
          %1052 = vdwg.mxu0
          %s1053 = smul.u32 %s959, 8
          %s1054 = scalar_lea.vmem [#allocation2], %s1053
          %v1055 = vld [vmem:[%s1054] sm:$0xff]
          %v1057 = vlaneseq
          %v1058 = vshrl.u32 %v1057, 7
          %v1059 = vsub.s32 0, %v1058
          %v1060 = vrot.slane %v957, %v1059
          %vm1062 = vcmask 64512
          %v1064 = vsel %vm1062, %v1050, 0
          %1066 = vmatprep.subr.mxu0 0.0
          %1067 = vmatpush1.msra.mxu0 %v1055
          %1068 = vmatprep.subr.mxu0 0.0
          %1069 = vmatpush1.msra.mxu0 0.0
          %1070 = vmatprep.subr.mxu0 0.0
          %1071 = vmatpush1.msra.mxu0 0.0
          %1072 = vmatprep.subr.mxu0 0.0
          %1073 = vmatpush1.msra.mxu0 0.0
          %1074 = vmatprep.subr.mxu0 0.0
          %1075 = vmatpush1.msra.mxu0 0.0
          %1076 = vmatprep.subr.mxu0 0.0
          %1077 = vmatpush1.msra.mxu0 0.0
          %1078 = vmatprep.subr.mxu0 0.0
          %1079 = vmatpush1.msra.mxu0 0.0
          %1080 = vmatprep.subr.mxu0 0.0
          %1081 = vmatpush1.msra.mxu0 0.0
          %1082 = vmatprep.subr.mxu0 0.0
          %1083 = vmatpush1.msra.mxu0 0.0
          %1084 = vmatprep.subr.mxu0 0.0
          %1085 = vmatpush1.msra.mxu0 0.0
          %1086 = vmatprep.subr.mxu0 0.0
          %1087 = vmatpush1.msra.mxu0 0.0
          %1088 = vmatprep.subr.mxu0 0.0
          %1089 = vmatpush1.msra.mxu0 0.0
          %1090 = vmatprep.subr.mxu0 0.0
          %1091 = vmatpush1.msra.mxu0 0.0
          %1092 = vmatprep.subr.mxu0 0.0
          %1093 = vmatpush1.msra.mxu0 0.0
          %1094 = vmatprep.subr.mxu0 0.0
          %1095 = vmatpush1.msra.mxu0 0.0
          %1096 = vmatprep.subr.mxu0 0.0
          %1097 = vmatpush1.msra.mxu0 0.0
          %1098 = vmatprep.subr.mxu0 0.0
          %1099 = vmatpush1.msra.mxu0 0.0
          %1100 = vmatprep.subr.mxu0 0.0
          %1101 = vmatpush1.msra.mxu0 0.0
          %1102 = vmatprep.subr.mxu0 0.0
          %1103 = vmatpush1.msra.mxu0 0.0
          %1104 = vmatprep.subr.mxu0 0.0
          %1105 = vmatpush1.msra.mxu0 0.0
          %1106 = vmatprep.subr.mxu0 0.0
          %1107 = vmatpush1.msra.mxu0 0.0
          %1108 = vmatprep.subr.mxu0 0.0
          %1109 = vmatpush1.msra.mxu0 0.0
          %1110 = vmatprep.subr.mxu0 0.0
          %1111 = vmatpush1.msra.mxu0 0.0
          %1112 = vmatprep.subr.mxu0 0.0
          %1113 = vmatpush1.msra.mxu0 0.0
          %1114 = vmatprep.subr.mxu0 0.0
          %1115 = vmatpush1.msra.mxu0 0.0
          %1116 = vmatprep.subr.mxu0 0.0
          %1117 = vmatpush1.msra.mxu0 0.0
          %1118 = vmatprep.subr.mxu0 0.0
          %1119 = vmatpush1.msra.mxu0 0.0
          %1120 = vmatprep.subr.mxu0 0.0
          %1121 = vmatpush1.msra.mxu0 0.0
          %1122 = vmatprep.subr.mxu0 0.0
          %1123 = vmatpush1.msra.mxu0 0.0
          %1124 = vmatprep.subr.mxu0 0.0
          %1125 = vmatpush1.msra.mxu0 0.0
          %1126 = vmatprep.subr.mxu0 0.0
          %1127 = vmatpush1.msra.mxu0 0.0
          %1128 = vmatprep.subr.mxu0 0.0
          %1129 = vmatpush1.msra.mxu0 0.0
          %1130 = vmatprep.mubr.f32.mxu0 0.0
          %1131 = vmatmul.mubr.f32.gmra.mrb[0].mxu0 %v1064
          %v1132 = vpop.f32.mrb[0].mxu0
          %v1133 = vadd.f32 %v1060, %v1132
          %v1134 = vpop.f32.mrb[0].mxu0
          %1135 = vdwg.mxu0
          %v1136 = vsel %vm1062, %v1133, -inf
          %1137 = vmax.xlane.f32.xlu0 %v1136
          %v1138 = vpop.xlane.xlu0 %1137
          %v1139 = vsub.f32 %v1133, %v1138
          %v1140 = vmul.f32 %v1139, 1.442695
          %v1141 = vpow.pop %v1140
          %v1142 = vsel %vm1062, %v1141, 0.0
          %1143 = vadd.xlane.f32.xlu0 %v1142
          %v1144 = vpop.xlane.xlu0 %1143
          %s1145 = scalar_lea.vmem [#allocation3], %s1053
          %v1146 = vld [vmem:[%s1145] sm:$0xff]
          %v1148 = vsel %vm1062, %v1141, 0
          %v1151 = vsel %vm1062, %v1146, 0
          %1153 = vmatprep.subr.mxu0 0.0
          %1154 = vmatpush1.xpose.msra.mxu0 %v1151
          %1155 = vmatprep.subr.mxu0 0.0
          %1156 = vmatpush1.xpose.msra.mxu0 0.0
          %1157 = vmatprep.subr.mxu0 0.0
          %1158 = vmatpush1.xpose.msra.mxu0 0.0
          %1159 = vmatprep.subr.mxu0 0.0
          %1160 = vmatpush1.xpose.msra.mxu0 0.0
          %1161 = vmatprep.subr.mxu0 0.0
          %1162 = vmatpush1.xpose.msra.mxu0 0.0
          %1163 = vmatprep.subr.mxu0 0.0
          %1164 = vmatpush1.xpose.msra.mxu0 0.0
          %1165 = vmatprep.subr.mxu0 0.0
          %1166 = vmatpush1.xpose.msra.mxu0 0.0
          %1167 = vmatprep.subr.mxu0 0.0
          %1168 = vmatpush1.xpose.msra.mxu0 0.0
          %1169 = vmatprep.subr.mxu0 0.0
          %1170 = vmatpush1.xpose.msra.mxu0 0.0
          %1171 = vmatprep.subr.mxu0 0.0
          %1172 = vmatpush1.xpose.msra.mxu0 0.0
          %1173 = vmatprep.subr.mxu0 0.0
          %1174 = vmatpush1.xpose.msra.mxu0 0.0
          %1175 = vmatprep.subr.mxu0 0.0
          %1176 = vmatpush1.xpose.msra.mxu0 0.0
          %1177 = vmatprep.subr.mxu0 0.0
          %1178 = vmatpush1.xpose.msra.mxu0 0.0
          %1179 = vmatprep.subr.mxu0 0.0
          %1180 = vmatpush1.xpose.msra.mxu0 0.0
          %1181 = vmatprep.subr.mxu0 0.0
          %1182 = vmatpush1.xpose.msra.mxu0 0.0
          %1183 = vmatprep.subr.mxu0 0.0
          %1184 = vmatpush1.xpose.msra.mxu0 0.0
          %1185 = vmatprep.subr.mxu0 0.0
          %1186 = vmatpush1.xpose.msra.mxu0 0.0
          %1187 = vmatprep.subr.mxu0 0.0
          %1188 = vmatpush1.xpose.msra.mxu0 0.0
          %1189 = vmatprep.subr.mxu0 0.0
          %1190 = vmatpush1.xpose.msra.mxu0 0.0
          %1191 = vmatprep.subr.mxu0 0.0
          %1192 = vmatpush1.xpose.msra.mxu0 0.0
          %1193 = vmatprep.subr.mxu0 0.0
          %1194 = vmatpush1.xpose.msra.mxu0 0.0
          %1195 = vmatprep.subr.mxu0 0.0
          %1196 = vmatpush1.xpose.msra.mxu0 0.0
          %1197 = vmatprep.subr.mxu0 0.0
          %1198 = vmatpush1.xpose.msra.mxu0 0.0
          %1199 = vmatprep.subr.mxu0 0.0
          %1200 = vmatpush1.xpose.msra.mxu0 0.0
          %1201 = vmatprep.subr.mxu0 0.0
          %1202 = vmatpush1.xpose.msra.mxu0 0.0
          %1203 = vmatprep.subr.mxu0 0.0
          %1204 = vmatpush1.xpose.msra.mxu0 0.0
          %1205 = vmatprep.subr.mxu0 0.0
          %1206 = vmatpush1.xpose.msra.mxu0 0.0
          %1207 = vmatprep.subr.mxu0 0.0
          %1208 = vmatpush1.xpose.msra.mxu0 0.0
          %1209 = vmatprep.subr.mxu0 0.0
          %1210 = vmatpush1.xpose.msra.mxu0 0.0
          %1211 = vmatprep.subr.mxu0 0.0
          %1212 = vmatpush1.xpose.msra.mxu0 0.0
          %1213 = vmatprep.subr.mxu0 0.0
          %1214 = vmatpush1.xpose.msra.mxu0 0.0
          %1215 = vmatprep.subr.mxu0 0.0
          %1216 = vmatpush1.xpose.msra.mxu0 0.0
          %1217 = vmatprep.mubr.f32.mxu0 0.0
          %1218 = vmatmul.mubr.f32.gmra.mrb[0].mxu0 %v1148
          %v1219 = vpop.f32.mrb[0].mxu0
          %v1220 = vadd.f32 0.0, %v1219
          %v1221 = vpop.f32.mrb[0].mxu0
          %1222 = vdwg.mxu0
          %v1223 = vrcp.pop %v1144
          %v1224 = vmul.f32 %v1220, %v1223
          %s1225 = scalar_lea.vmem [#allocation19], %s1053
          %v1226 = vld [vmem:[%s1225] sm:$0xff]
          %v1228 = vsel %vm1062, %v1224, 0
          %1230 = vmatprep.subr.mxu0 0.0
          %1231 = vmatpush1.msra.mxu0 %v1226
          %1232 = vmatprep.subr.mxu0 0.0
          %1233 = vmatpush1.msra.mxu0 0.0
          %1234 = vmatprep.subr.mxu0 0.0
          %1235 = vmatpush1.msra.mxu0 0.0
          %1236 = vmatprep.subr.mxu0 0.0
          %1237 = vmatpush1.msra.mxu0 0.0
          %1238 = vmatprep.subr.mxu0 0.0
          %1239 = vmatpush1.msra.mxu0 0.0
          %1240 = vmatprep.subr.mxu0 0.0
          %1241 = vmatpush1.msra.mxu0 0.0
          %1242 = vmatprep.subr.mxu0 0.0
          %1243 = vmatpush1.msra.mxu0 0.0
          %1244 = vmatprep.subr.mxu0 0.0
          %1245 = vmatpush1.msra.mxu0 0.0
          %1246 = vmatprep.subr.mxu0 0.0
          %1247 = vmatpush1.msra.mxu0 0.0
          %1248 = vmatprep.subr.mxu0 0.0
          %1249 = vmatpush1.msra.mxu0 0.0
          %1250 = vmatprep.subr.mxu0 0.0
          %1251 = vmatpush1.msra.mxu0 0.0
          %1252 = vmatprep.subr.mxu0 0.0
          %1253 = vmatpush1.msra.mxu0 0.0
          %1254 = vmatprep.subr.mxu0 0.0
          %1255 = vmatpush1.msra.mxu0 0.0
          %1256 = vmatprep.subr.mxu0 0.0
          %1257 = vmatpush1.msra.mxu0 0.0
          %1258 = vmatprep.subr.mxu0 0.0
          %1259 = vmatpush1.msra.mxu0 0.0
          %1260 = vmatprep.subr.mxu0 0.0
          %1261 = vmatpush1.msra.mxu0 0.0
          %1262 = vmatprep.subr.mxu0 0.0
          %1263 = vmatpush1.msra.mxu0 0.0
          %1264 = vmatprep.subr.mxu0 0.0
          %1265 = vmatpush1.msra.mxu0 0.0
          %1266 = vmatprep.subr.mxu0 0.0
          %1267 = vmatpush1.msra.mxu0 0.0
          %1268 = vmatprep.subr.mxu0 0.0
          %1269 = vmatpush1.msra.mxu0 0.0
          %1270 = vmatprep.subr.mxu0 0.0
          %1271 = vmatpush1.msra.mxu0 0.0
          %1272 = vmatprep.subr.mxu0 0.0
          %1273 = vmatpush1.msra.mxu0 0.0
          %1274 = vmatprep.subr.mxu0 0.0
          %1275 = vmatpush1.msra.mxu0 0.0
          %1276 = vmatprep.subr.mxu0 0.0
          %1277 = vmatpush1.msra.mxu0 0.0
          %1278 = vmatprep.subr.mxu0 0.0
          %1279 = vmatpush1.msra.mxu0 0.0
          %1280 = vmatprep.subr.mxu0 0.0
          %1281 = vmatpush1.msra.mxu0 0.0
          %1282 = vmatprep.subr.mxu0 0.0
          %1283 = vmatpush1.msra.mxu0 0.0
          %1284 = vmatprep.subr.mxu0 0.0
          %1285 = vmatpush1.msra.mxu0 0.0
          %1286 = vmatprep.subr.mxu0 0.0
          %1287 = vmatpush1.msra.mxu0 0.0
          %1288 = vmatprep.subr.mxu0 0.0
          %1289 = vmatpush1.msra.mxu0 0.0
          %1290 = vmatprep.subr.mxu0 0.0
          %1291 = vmatpush1.msra.mxu0 0.0
          %1292 = vmatprep.subr.mxu0 0.0
          %1293 = vmatpush1.msra.mxu0 0.0
          %1294 = vmatprep.mubr.f32.mxu0 0.0
          %1295 = vmatmul.mubr.f32.gmra.mrb[0].mxu0 %v1228
          %v1296 = vpop.f32.mrb[0].mxu0
          %v1297 = vadd.f32 0.0, %v1296
          %v1298 = vpop.f32.mrb[0].mxu0
          %1299 = vdwg.mxu0
          %v1300 = vadd.f32 %v964, %v1297
        $region133: #{tpu_custom_call.1} parent=71 // loop_footer
          %s963 = sadd.s32 1, %s959
        $region134: #{tpu_custom_call.1} parent=71 // loop_footer_branch
          %958 = sbr.rel target = $region130
        $region135: #{tpu_custom_call.1} parent=71 // loop_exit
          _
        %v1301 = vld [vmem:[#allocation21] sm:$0x1]
        %v1303 = vlaneseq
        %v1304 = vshrl.u32 %v1303, 7
        %v1305 = vsub.s32 0, %v1304
        %v1306 = vrot.slane %v1301, %v1305
        %v1308 = vadd.f32 %v964, %v1306
        %v1309 = vadd.f32 %v1308, %v956
        %vm1310 = vcmask 261120
        %v1311 = vsel %vm1310, %v1309, 0.0
        %1312 = vadd.xlane.f32.xlu0 %v1311
        %v1313 = vpop.xlane.xlu0 %1312
        %v1314 = vrcp.pop 32.0
        %v1315 = vmul.f32 %v1313, %v1314
        %v1316 = vsub.f32 %v1309, %v1315
        %v1317 = vmul.f32 %v1316, %v1316
        %v1318 = vsel %vm1310, %v1317, 0.0
        %1319 = vadd.xlane.f32.xlu0 %v1318
        %v1320 = vpop.xlane.xlu0 %1319
        %v1321 = vmul.f32 %v1320, %v1314
        %v1322 = vadd.f32 %v1321, 1e-12
        %v1323 = vrsqrt.pop %v1322
        %v1324 = vmul.f32 %v1316, %v1323
        %v1325 = vld [vmem:[#allocation22] sm:$0x1]
        %v1327 = vlaneseq
        %v1328 = vshrl.u32 %v1327, 7
        %v1329 = vsub.s32 0, %v1328
        %v1330 = vrot.slane %v1325, %v1329
        %v1332 = vmul.f32 %v1330, %v1324
        %v1333 = vld [vmem:[#allocation24] sm:$0x1]
        %v1335 = vlaneseq
        %v1336 = vshrl.u32 %v1335, 7
        %v1337 = vsub.s32 0, %v1336
        %v1338 = vrot.slane %v1333, %v1337
        %v1340 = vadd.f32 %v1332, %v1338
        %1341 = vst.msk [vmem:[%s679] sm:$0xff] %vm1310, %v1340
        %s1342 = sand.u32 %s350, 1
        %s1343 = scalar_lea.sflag [#allocation6], %s1342
        %s1344 = sand.u32 %s350, 1
        %s1345 = smul.addr %s1344, 8
        %s1346 = scalar_lea.vmem [#allocation25], %s1345
        // Predicated region
        $region136: #{tpu_custom_call.1} parent=71 // pred_check
          %p1347 = pneg %p360
        $region137: #{tpu_custom_call.1} parent=71 // pred_check_branch
          %1349 = sbr.rel (%p1347) target = $region139
        $region138: #{tpu_custom_call.1} parent=71 // pred_region
          %s1351 = ssub.s32 128, 128
          %1352 = vsyncadd %s1343, %s1351
          %s1353 = sadd.s32 %s43, %s42
          %s1354 = smul.addr %s1353, 128
          %s1355 = scalar_lea.hbm %s13, %s1354
          %s1357 = sshll.u32 %s1346, 4
          %s1358 = int_to_ptr.vmem [resolvable:$true] %s1357
          %1360 = dma.vmem_to_hbm [thread:$0]  %s1358, 128, %s1355, %s1343
        $region139: #{tpu_custom_call.1} parent=71 // pred_fallthru
          _
      $region72: #{tpu_custom_call.1} parent=5 // pred_fallthru
        _
      %p1361 = scmp.le.s32.totalorder 2, %s33
      // Predicated region
      $region140: #{tpu_custom_call.1} parent=5 // pred_check
        %p1362 = pneg %p1361
      $region141: #{tpu_custom_call.1} parent=5 // pred_check_branch
        %1364 = sbr.rel (%p1362) target = $region143
      $region142: #{tpu_custom_call.1} parent=5 // pred_region
        %s1365 = ssub.s32 %s33, 2
        // Predicated region
        $region144: #{tpu_custom_call.1} parent=142 // pred_check
          %p1366 = pneg %p366
        $region145: #{tpu_custom_call.1} parent=142 // pred_check_branch
          %1368 = sbr.rel (%p1366) target = $region147
        $region146: #{tpu_custom_call.1} parent=142 // pred_region
          %s1369 = sand.u32 %s351, 1
          %s1370 = scalar_lea.sflag [#allocation6], %s1369
          %s1371 = sand.u32 %s351, 1
          %s1372 = smul.addr %s1371, 8
          %s1373 = scalar_lea.vmem [#allocation25], %s1372
          %1374 = dma.done %s1370, 128
        $region147: #{tpu_custom_call.1} parent=142 // pred_fallthru
          _
      $region143: #{tpu_custom_call.1} parent=5 // pred_fallthru
        _
    $region6: #{tpu_custom_call.1} parent=1 // loop_footer
      %s37 = sadd.s32 1, %s33
    $region7: #{tpu_custom_call.1} parent=1 // loop_footer_branch
      %32 = sbr.rel target = $region3
    $region8: #{tpu_custom_call.1} parent=1 // loop_exit
      _
    %1375 = vsyncpa [#allocation5], 1
    %s1376 = scalar_lea.sflag [#allocation5], 1
    %1377 = vsyncpa %s1376, 1
    %1378 = vsyncpa [#allocation8], 1
    %s1379 = scalar_lea.sflag [#allocation8], 1
    %1380 = vsyncpa %s1379, 1
    %1381 = vsyncpa [#allocation11], 1
    %1382 = vsyncpa [#allocation14], 1
    %1383 = vsyncpa [#allocation17], 1
    %1384 = vsyncpa [#allocation20], 1
    %1385 = vsyncpa [#allocation23], 1
    %1386 = vsyncpa [#allocation6], 1
    %s1387 = scalar_lea.sflag [#allocation6], 1
    %1388 = vsyncpa %s1387, 1

</llo_original>
